<compile_context>
chip_gen: v5e
topology: v5e:2x2
jax: 0.10.0
libtpu: 0.0.40
codegen_flags: <defaults>
</compile_context>

<pallas_src>
import jax
import jax.numpy as jnp
from jax import lax
from jax.experimental import pallas as pl
from jax.experimental.pallas import tpu as pltpu

# ----------------------------------------------------------------------------
# Model dimensions (synthetic but consistent with the forward pass semantics)
# ----------------------------------------------------------------------------
A_DIM = 16       # continuous action dim (z_cont)
D_DIM = 16       # discrete latent dim (z_disc, broadcast over batch)
Z_DIM = A_DIM + D_DIM          # concatenated latent
F_DIM = 128                    # decoded feature width (discrete|continuous|binary)
N_DISCRETE = 32                # decoded[:, 0:32]    -> softmax   (discrete feats)
N_CONT = 64                    # decoded[:, 32:96]   -> identity  (continuous feats)
N_BIN = 32                     # decoded[:, 96:128]  -> sigmoid   (binary feats)
G_DIM = 128                    # generator hidden/output width
E_DIM = 128                    # classifier encoder width
GE_DIM = G_DIM + E_DIM         # fused generator+encoder output width
C_CLS = 8                      # number of classes
CLS_PAD = 128                  # classifier logits padded to one full lane tile

D_REWARD_COEFF = 1.0
CL_REWARD_COEFF = 0.5

MXU_DTYPE = jnp.bfloat16       # MXU operand dtype; VPU/EUP math stays f32
BM_MAX = 128                   # batch tile; 128 fills MXU rows on all gens
                               # (raise to 256 on v6e/v7x for prod batches)

# rows of the packed [8, 128] "misc" parameter tile
_ROW_B_DEC = 0   # decoder bias (effective: b_dec + disc @ w_dec[A:])   [F_DIM]
_ROW_B_GEN = 1   # generator bias                                       [G_DIM]
_ROW_B_ENC = 2   # encoder bias                                         [E_DIM]
_ROW_W_DIS = 3   # discriminator weight                                 [G_DIM]
_ROW_B_DIS = 4   # discriminator bias                                   col 0
_ROW_B_CLS = 5   # classifier bias (padded cols = -1e30)                [CLS_PAD]


# ----------------------------------------------------------------------------
# Pallas kernel: decoder -> (generator | encoder fused) -> discriminator /
#                classifier -> per-row CE & BCE loss terms
# ----------------------------------------------------------------------------
def env_kernel(action_ref, tgt_ref, wdec_ref, wge_ref, wcls_ref, misc_ref,
               decoded_ref, loss_ref):
    f32 = jnp.float32

    def fast_recip(x):
        # approx EUP reciprocal + one Newton step: ~f32-exact, cheaper than the
        # full f32 divide chain, and the EUP slot is otherwise idle here.
        r = pl.reciprocal(x, approx=True)
        return r * (2.0 - x * r)

    act = action_ref[...].astype(MXU_DTYPE)                   # [BM, A] MXU operand

    b_dec = misc_ref[_ROW_B_DEC:_ROW_B_DEC + 1, :]            # [1, F] (disc folded in)
    b_gen = misc_ref[_ROW_B_GEN:_ROW_B_GEN + 1, :]            # [1, G]
    b_enc = misc_ref[_ROW_B_ENC:_ROW_B_ENC + 1, :]            # [1, E]
    w_dis = misc_ref[_ROW_W_DIS:_ROW_W_DIS + 1, :]            # [1, G]
    b_dis = misc_ref[_ROW_B_DIS:_ROW_B_DIS + 1, 0:1]          # [1, 1]
    b_cls = misc_ref[_ROW_B_CLS:_ROW_B_CLS + 1, :]            # [1, 128], pads = -1e30

    # ---- decoder: z = [action | disc]; the disc half was folded into b_dec ---
    h = jnp.dot(act, wdec_ref[...], preferred_element_type=f32) + b_dec   # [BM, F]

    col = lax.broadcasted_iota(jnp.int32, h.shape, 1)
    d_mask = col < N_DISCRETE
    b_mask = col >= (N_DISCRETE + N_CONT)

    # masked softmax over the discrete block only
    d_logits = jnp.where(d_mask, h, jnp.float32(-1e30))
    d_max = jnp.max(d_logits, axis=-1, keepdims=True)
    d_exp = jnp.where(d_mask, jnp.exp(d_logits - d_max), 0.0)
    d_soft = d_exp * fast_recip(jnp.sum(d_exp, axis=-1, keepdims=True))

    # numerically-stable sigmoid for the binary block (exp argument always <= 0)
    e = jnp.exp(-jnp.abs(h))
    r = fast_recip(1.0 + e)
    b_sig = jnp.where(h >= 0, r, e * r)

    decoded = jnp.where(d_mask, d_soft, jnp.where(b_mask, b_sig, h))      # [BM, F]
    decoded_ref[...] = decoded.astype(decoded_ref.dtype)

    # ---- generator + classifier-encoder fused into ONE [128,256] MXU pass ----
    ge = jnp.dot(decoded.astype(MXU_DTYPE), wge_ref[...],
                 preferred_element_type=f32)                              # [BM, G+E]
    gen = jnp.tanh(ge[:, 0:G_DIM] + b_gen)                                # [BM, G]
    enc = jnp.maximum(ge[:, G_DIM:GE_DIM] + b_enc, 0.0)                   # [BM, E]

    # ---- discriminator head + BCE(sigmoid(x), 1) = softplus(-x), stable form -
    dis_logit = jnp.sum(gen * w_dis, axis=-1, keepdims=True) + b_dis      # [BM, 1]
    bce_row = (jnp.maximum(-dis_logit, 0.0)
               + jnp.log1p(jnp.exp(-jnp.abs(dis_logit))))                 # [BM, 1]

    # ---- classifier logits in one full 128-lane tile + per-row cross entropy -
    logits = jnp.dot(enc.astype(MXU_DTYPE), wcls_ref[...],
                     preferred_element_type=f32) + b_cls                  # [BM, 128]
    lmax = jnp.max(logits, axis=-1, keepdims=True)
    lse = lmax + jnp.log(jnp.sum(jnp.exp(logits - lmax), axis=-1, keepdims=True))
    cls_col = lax.broadcasted_iota(jnp.int32, logits.shape, 1)
    onehot = (cls_col == tgt_ref[...]).astype(f32)                        # in-kernel one-hot
    picked = jnp.sum(onehot * logits, axis=-1, keepdims=True)
    ce_row = lse - picked                                                 # [BM, 1]

    # lane-dense (BM, 128) loss store: lane 0 = CE, lane 1 = BCE, rest zero.
    lane = lax.broadcasted_iota(jnp.int32, loss_ref.shape, 1)
    loss_ref[...] = (jnp.where(lane == 0, ce_row, 0.0)
                     + jnp.where(lane == 1, bce_row, 0.0))


# ----------------------------------------------------------------------------
# Parameter construction + packing
# ----------------------------------------------------------------------------
def make_params(key):
    ks = jax.random.split(key, 10)

    def lin(k, din, dout, scale=0.1):
        return scale * jax.random.normal(k, (din, dout), jnp.float32)

    return {
        "w_dec": lin(ks[0], Z_DIM, F_DIM),
        "b_dec": lin(ks[1], 1, F_DIM, 0.05),
        "w_gen": lin(ks[2], F_DIM, G_DIM),
        "b_gen": lin(ks[3], 1, G_DIM, 0.05),
        "w_dis": lin(ks[4], 1, G_DIM),           # stored as a row [1, G]
        "b_dis": lin(ks[5], 1, 1, 0.05),
        "w_enc": lin(ks[6], F_DIM, E_DIM),
        "b_enc": lin(ks[7], 1, E_DIM, 0.05),
        "w_cls": lin(ks[8], E_DIM, C_CLS),
        "b_cls": lin(ks[9], 1, C_CLS, 0.05),
    }


def pack_params(p):
    """Pack 10 per-layer tensors into 5 DMA-friendly arrays (done once).

    Matmul weights are stored in MXU_DTYPE (bf16); all biases / the
    discriminator row stay f32 so VPU math stays f32 on every generation.
    """
    misc = jnp.zeros((8, F_DIM), jnp.float32)
    misc = misc.at[_ROW_B_DEC, :].set(p["b_dec"][0])
    misc = misc.at[_ROW_B_GEN, :].set(p["b_gen"][0])
    misc = misc.at[_ROW_B_ENC, :].set(p["b_enc"][0])
    misc = misc.at[_ROW_W_DIS, :].set(p["w_dis"][0])
    misc = misc.at[_ROW_B_DIS, 0].set(p["b_dis"][0, 0])
    b_cls_pad = jnp.full((CLS_PAD,), -1e30, jnp.float32).at[:C_CLS].set(p["b_cls"][0])
    misc = misc.at[_ROW_B_CLS, :].set(b_cls_pad)

    w_ge = jnp.concatenate([p["w_gen"], p["w_enc"]], axis=1)          # [F, G+E] fused
    w_cls_pad = (jnp.zeros((E_DIM, CLS_PAD), jnp.float32)
                 .at[:, :C_CLS].set(p["w_cls"]))                      # pad to 128 lanes
    return {
        "w_dec_act": p["w_dec"][:A_DIM].astype(MXU_DTYPE),            # [A, F] for kernel
        "w_dec_disc": p["w_dec"][A_DIM:],                             # [D, F] f32, folded per call
        "w_ge": w_ge.astype(MXU_DTYPE),
        "w_cls": w_cls_pad.astype(MXU_DTYPE),
        "misc": misc,
    }


# ----------------------------------------------------------------------------
# Wrapper: pallas_call over a parallel batch grid + tiny scalar finalize
# ----------------------------------------------------------------------------
@jax.jit
def _env_forward_jit(action, disc_vals, episode_target, packed):
    f32 = jnp.float32
    b = action.shape[0]
    bm = b if b <= BM_MAX else BM_MAX
    if b % bm != 0:
        raise ValueError(f"batch {b} must be a multiple of the batch tile {bm}")
    num_tiles = b // bm

    tgt = episode_target
    if tgt.ndim == 1:
        tgt = tgt[:, None]
    tgt = tgt[:, 0:1].astype(jnp.int32)                               # [B, 1]
    act = action.astype(f32)
    disc_row = jnp.reshape(disc_vals, (1, D_DIM)).astype(f32)

    # Fold the batch-invariant disc projection into the decoder bias ONCE per
    # call; the kernel then only computes act @ w_dec[:A_DIM].
    b_dec_eff = packed["misc"][_ROW_B_DEC] + (disc_row @ packed["w_dec_disc"])[0]
    misc = packed["misc"].at[_ROW_B_DEC, :].set(b_dec_eff)

    def nbytes(x):
        return x.size * x.dtype.itemsize

    flops = 2 * b * (A_DIM * F_DIM + F_DIM * GE_DIM + E_DIM * CLS_PAD)
    transcendentals = b * (N_DISCRETE + F_DIM + G_DIM + CLS_PAD + 4)
    bytes_accessed = (nbytes(act) + nbytes(tgt) + nbytes(packed["w_dec_act"])
                      + nbytes(packed["w_ge"]) + nbytes(packed["w_cls"])
                      + nbytes(misc) + b * F_DIM * 4 + b * CLS_PAD * 4)

    decoded, losses = pl.pallas_call(
        env_kernel,
        out_shape=(
            jax.ShapeDtypeStruct((b, F_DIM), f32),     # decoded / next_state
            jax.ShapeDtypeStruct((b, CLS_PAD), f32),   # lane-dense per-row (ce, bce)
        ),
        grid_spec=pltpu.PrefetchScalarGridSpec(
            num_scalar_prefetch=0,
            grid=(num_tiles,),
            in_specs=[
                pl.BlockSpec((bm, A_DIM), lambda i: (i, 0)),        # action tile
                pl.BlockSpec((bm, 1), lambda i: (i, 0)),            # target tile
                pl.BlockSpec((A_DIM, F_DIM), lambda i: (0, 0)),     # w_dec (action half)
                pl.BlockSpec((F_DIM, GE_DIM), lambda i: (0, 0)),    # fused w_gen|w_enc
                pl.BlockSpec((E_DIM, CLS_PAD), lambda i: (0, 0)),   # padded w_cls
                pl.BlockSpec((8, F_DIM), lambda i: (0, 0)),         # packed biases/w_dis
            ],
            out_specs=(
                pl.BlockSpec((bm, F_DIM), lambda i: (i, 0)),        # decoded (lane-dense)
                pl.BlockSpec((bm, CLS_PAD), lambda i: (i, 0)),      # losses (lane-dense)
            ),
        ),
        compiler_params=pltpu.CompilerParams(
            dimension_semantics=("parallel",)),   # batch tiles -> both TCs on v7x
        cost_estimate=pl.CostEstimate(
            flops=flops, transcendentals=transcendentals,
            bytes_accessed=bytes_accessed),
    )(act, tgt, packed["w_dec_act"], packed["w_ge"], packed["w_cls"], misc)

    ce = jnp.mean(losses[:, 0])
    bce = jnp.mean(losses[:, 1])
    reward = CL_REWARD_COEFF * jnp.abs(ce) + D_REWARD_COEFF * bce
    return decoded, reward


def env_forward(action, disc_vals, episode_target, packed_params):
    """Pallas equivalent of Env.forward -> (next_state, reward, done)."""
    decoded, reward = _env_forward_jit(action, disc_vals, episode_target,
                                       packed_params)
    # done is a plain Python bool, as in the original module.
    return decoded, reward, True


# ----------------------------------------------------------------------------
# Pure-JAX reference (for in-script sanity checks)
# ----------------------------------------------------------------------------
def env_forward_ref(action, disc_vals, episode_target, params, mxu_dtype=None):
    """Reference forward. If mxu_dtype is set, matmul operands are rounded to
    that dtype (matching the kernel's MXU operand precision) while all other
    math stays f32."""
    f32 = jnp.float32
    if mxu_dtype is not None:
        q = lambda x: x.astype(mxu_dtype).astype(f32)
    else:
        q = lambda x: x.astype(f32)
    zc = action.astype(f32)
    zd = jnp.broadcast_to(disc_vals.astype(f32)[None, :], (action.shape[0], D_DIM))
    # disc projection stays f32 (the kernel wrapper folds it into the bias in f32)
    h = (q(zc) @ q(params["w_dec"][:A_DIM]) + zd @ params["w_dec"][A_DIM:]
         + params["b_dec"])
    d = jax.nn.softmax(h[:, :N_DISCRETE], axis=-1)
    c = h[:, N_DISCRETE:N_DISCRETE + N_CONT]
    bpart = jax.nn.sigmoid(h[:, N_DISCRETE + N_CONT:])
    decoded = jnp.concatenate([d, c, bpart], axis=1)
    gen = jnp.tanh(q(decoded) @ q(params["w_gen"]) + params["b_gen"])
    dis_logit = gen @ params["w_dis"].T + params["b_dis"]
    bce = jnp.mean(jax.nn.softplus(-dis_logit))   # == BCE(sigmoid(dis_logit), ones)
    enc = jax.nn.relu(q(decoded) @ q(params["w_enc"]) + params["b_enc"])
    logits = q(enc) @ q(params["w_cls"]) + params["b_cls"]
    tgt = episode_target if episode_target.ndim == 1 else episode_target[:, 0]
    ce = jnp.mean(-jax.nn.log_softmax(logits)[jnp.arange(logits.shape[0]), tgt])
    reward = CL_REWARD_COEFF * jnp.abs(ce) + D_REWARD_COEFF * bce
    return decoded, reward


if __name__ == "__main__":
    key = jax.random.PRNGKey(0)
    k_par, k_act, k_disc, k_tgt = jax.random.split(key, 4)

    params = make_params(k_par)
    packed = pack_params(params)

    B = 128   # demo batch: one full 128-row MXU tile, grid collapses to (1,)
    action = jax.random.normal(k_act, (B, A_DIM), jnp.float32)          # z_cont
    disc_vals = jax.random.normal(k_disc, (D_DIM,), jnp.float32)        # list(disc.values())
    episode_target = jax.random.randint(k_tgt, (B, 1), 0, C_CLS, dtype=jnp.int32)

    next_state, reward, done = env_forward(action, disc_vals, episode_target, packed)
    jax.block_until_ready((next_state, reward))

    # 1) tight check against a reference that uses the same bf16 MXU-operand
    #    rounding (tests the kernel implementation itself).
    ref_state_q, ref_reward_q = env_forward_ref(
        action, disc_vals, episode_target, params, mxu_dtype=MXU_DTYPE)
    assert next_state.shape == (B, F_DIM)
    assert jnp.allclose(next_state, ref_state_q, atol=2e-4, rtol=2e-4), \
        float(jnp.max(jnp.abs(next_state - ref_state_q)))
    assert jnp.allclose(reward, ref_reward_q, atol=2e-4, rtol=2e-4), \
        (float(reward), float(ref_reward_q))

    # 2) loose semantic check against full-f32 math (only bf16 operand rounding
    #    separates the two).
    ref_state_f, ref_reward_f = env_forward_ref(
        action, disc_vals, episode_target, params, mxu_dtype=None)
    assert jnp.allclose(next_state, ref_state_f, atol=5e-2, rtol=5e-2), \
        float(jnp.max(jnp.abs(next_state - ref_state_f)))
    assert jnp.allclose(reward, ref_reward_f, atol=5e-2, rtol=5e-2), \
        (float(reward), float(ref_reward_f))

    assert done is True

    # TODO(synk): the original module's dict bookkeeping (types_append /
    # type_concat), the self.count counter, and .detach().cpu().numpy() host
    # transfers are Python glue with no kernel equivalent; they are represented
    # by the masked softmax/identity/sigmoid feature-typing inside the kernel.
    print("KERNEL_OK")
</pallas_src>

<mosaic_0001>
module attributes {stable_mosaic.version = 11 : i64} {
  func.func @env_kernel(%arg0: i32, %arg1: memref<128x16xf32, #tpu.memory_space<vmem>>, %arg2: memref<128x1xi32, #tpu.memory_space<vmem>>, %arg3: memref<16x128xbf16, #tpu.memory_space<vmem>>, %arg4: memref<128x256xbf16, #tpu.memory_space<vmem>>, %arg5: memref<128x128xbf16, #tpu.memory_space<vmem>>, %arg6: memref<8x128xf32, #tpu.memory_space<vmem>>, %arg7: memref<128x128xf32, #tpu.memory_space<vmem>>, %arg8: memref<128x128xf32, #tpu.memory_space<vmem>>) attributes {dimension_semantics = [#tpu.dimension_semantics<parallel>], iteration_bounds = array<i64: 1>, scalar_prefetch = 0 : i64, scratch_operands = 0 : i64, tpu.core_type = #tpu.core_type<tc>, window_params = [{transform_indices = @transform_0, window_bounds = array<i64: 128, 16>}, {transform_indices = @transform_1, window_bounds = array<i64: 128, 1>}, {pipeline_mode = #tpu.pipeline_mode<synchronous>, transform_indices = @transform_2, window_bounds = array<i64: 16, 128>}, {pipeline_mode = #tpu.pipeline_mode<synchronous>, transform_indices = @transform_3, window_bounds = array<i64: 128, 256>}, {pipeline_mode = #tpu.pipeline_mode<synchronous>, transform_indices = @transform_4, window_bounds = array<i64: 128, 128>}, {pipeline_mode = #tpu.pipeline_mode<synchronous>, transform_indices = @transform_5, window_bounds = array<i64: 8, 128>}, {transform_indices = @transform_6, window_bounds = array<i64: 128, 128>}, {transform_indices = @transform_7, window_bounds = array<i64: 128, 128>}]} {
    %c0 = arith.constant 0 : index
    %c0_0 = arith.constant 0 : index
    %0 = vector.load %arg1[%c0, %c0_0] : memref<128x16xf32, #tpu.memory_space<vmem>>, vector<128x16xf32>
    %1 = arith.truncf %0 : vector<128x16xf32> to vector<128x16xbf16>
    %c0_1 = arith.constant 0 : index
    %c0_2 = arith.constant 0 : index
    %2 = vector.load %arg6[%c0_1, %c0_2] : memref<8x128xf32, #tpu.memory_space<vmem>>, vector<1x128xf32>
    %c1 = arith.constant 1 : index
    %c0_3 = arith.constant 0 : index
    %3 = vector.load %arg6[%c1, %c0_3] : memref<8x128xf32, #tpu.memory_space<vmem>>, vector<1x128xf32>
    %c2 = arith.constant 2 : index
    %c0_4 = arith.constant 0 : index
    %4 = vector.load %arg6[%c2, %c0_4] : memref<8x128xf32, #tpu.memory_space<vmem>>, vector<1x128xf32>
    %c3 = arith.constant 3 : index
    %c0_5 = arith.constant 0 : index
    %5 = vector.load %arg6[%c3, %c0_5] : memref<8x128xf32, #tpu.memory_space<vmem>>, vector<1x128xf32>
    %c4 = arith.constant 4 : index
    %c0_6 = arith.constant 0 : index
    %6 = vector.load %arg6[%c4, %c0_6] : memref<8x128xf32, #tpu.memory_space<vmem>>, vector<1x1xf32>
    %c5 = arith.constant 5 : index
    %c0_7 = arith.constant 0 : index
    %7 = vector.load %arg6[%c5, %c0_7] : memref<8x128xf32, #tpu.memory_space<vmem>>, vector<1x128xf32>
    %c0_8 = arith.constant 0 : index
    %c0_9 = arith.constant 0 : index
    %8 = vector.load %arg3[%c0_8, %c0_9] : memref<16x128xbf16, #tpu.memory_space<vmem>>, vector<16x128xbf16>
    %cst = arith.constant dense<0.000000e+00> : vector<128x128xf32>
    %9 = tpu.matmul %1, %8, %cst {dimension_numbers = #tpu.dot_dimension_numbers<[1], [0], [0], [1], [0, 0, 1, 1], [], []>} : vector<128x16xbf16>, vector<16x128xbf16>, vector<128x128xf32> -> vector<128x128xf32>
    %10 = vector.broadcast %2 : vector<1x128xf32> to vector<128x128xf32>
    %11 = arith.addf %9, %10 : vector<128x128xf32>
    %12 = tpu.iota {dimensions = array<i32: 1>} : vector<128x128xi32>
    %c32_i32 = arith.constant 32 : i32
    %13 = vector.broadcast %c32_i32 : i32 to vector<128x128xi32>
    %14 = arith.cmpi slt, %12, %13 : vector<128x128xi32>
    %c96_i32 = arith.constant 96 : i32
    %15 = vector.broadcast %c96_i32 : i32 to vector<128x128xi32>
    %16 = arith.cmpi sge, %12, %15 : vector<128x128xi32>
    %cst_10 = arith.constant -1.000000e+30 : f32
    %17 = vector.broadcast %cst_10 : f32 to vector<128x128xf32>
    %18 = arith.select %14, %11, %17 : vector<128x128xi1>, vector<128x128xf32>
    %cst_11 = arith.constant dense<0xFF800000> : vector<128xf32>
    %19 = vector.multi_reduction <maximumf>, %18, %cst_11 [1] : vector<128x128xf32> to vector<128xf32>
    %20 = vector.shape_cast %19 : vector<128xf32> to vector<128x1xf32>
    %21 = vector.broadcast %20 : vector<128x1xf32> to vector<128x128xf32>
    %22 = arith.subf %18, %21 : vector<128x128xf32>
    %23 = math.exp %22 : vector<128x128xf32>
    %cst_12 = arith.constant 0.000000e+00 : f32
    %24 = vector.broadcast %cst_12 : f32 to vector<128x128xf32>
    %25 = arith.select %14, %23, %24 : vector<128x128xi1>, vector<128x128xf32>
    %cst_13 = arith.constant dense<0.000000e+00> : vector<128xf32>
    %26 = vector.multi_reduction <add>, %25, %cst_13 [1] : vector<128x128xf32> to vector<128xf32>
    %27 = vector.shape_cast %26 : vector<128xf32> to vector<128x1xf32>
    %28 = tpu.reciprocal %27 {approx = true} : vector<128x1xf32> -> vector<128x1xf32>
    %29 = arith.mulf %27, %28 : vector<128x1xf32>
    %cst_14 = arith.constant 2.000000e+00 : f32
    %30 = vector.broadcast %cst_14 : f32 to vector<128x1xf32>
    %31 = arith.subf %30, %29 : vector<128x1xf32>
    %32 = arith.mulf %28, %31 : vector<128x1xf32>
    %33 = vector.broadcast %32 : vector<128x1xf32> to vector<128x128xf32>
    %34 = arith.mulf %25, %33 : vector<128x128xf32>
    %35 = math.absf %11 : vector<128x128xf32>
    %cst_15 = arith.constant 0.000000e+00 : f32
    %36 = vector.broadcast %cst_15 : f32 to vector<128x128xf32>
    %37 = arith.subf %36, %35 : vector<128x128xf32>
    %38 = math.exp %37 : vector<128x128xf32>
    %cst_16 = arith.constant 1.000000e+00 : f32
    %39 = vector.broadcast %cst_16 : f32 to vector<128x128xf32>
    %40 = arith.addf %39, %38 : vector<128x128xf32>
    %41 = tpu.reciprocal %40 {approx = true} : vector<128x128xf32> -> vector<128x128xf32>
    %42 = arith.mulf %40, %41 : vector<128x128xf32>
    %cst_17 = arith.constant 2.000000e+00 : f32
    %43 = vector.broadcast %cst_17 : f32 to vector<128x128xf32>
    %44 = arith.subf %43, %42 : vector<128x128xf32>
    %45 = arith.mulf %41, %44 : vector<128x128xf32>
    %cst_18 = arith.constant 0.000000e+00 : f32
    %46 = vector.broadcast %cst_18 : f32 to vector<128x128xf32>
    %47 = arith.cmpf oge, %11, %46 : vector<128x128xf32>
    %48 = arith.mulf %38, %45 : vector<128x128xf32>
    %49 = arith.select %47, %45, %48 : vector<128x128xi1>, vector<128x128xf32>
    %50 = arith.select %16, %49, %11 : vector<128x128xi1>, vector<128x128xf32>
    %51 = arith.select %14, %34, %50 : vector<128x128xi1>, vector<128x128xf32>
    %c0_19 = arith.constant 0 : index
    %c0_20 = arith.constant 0 : index
    %52 = vector.load %arg7[%c0_19, %c0_20] : memref<128x128xf32, #tpu.memory_space<vmem>>, vector<128x128xf32>
    tpu.vector_store %arg7[%c0_19, %c0_20], %51 {strides = array<i32>} : memref<128x128xf32, #tpu.memory_space<vmem>>, vector<128x128xf32>,
    %53 = arith.truncf %51 : vector<128x128xf32> to vector<128x128xbf16>
    %c0_21 = arith.constant 0 : index
    %c0_22 = arith.constant 0 : index
    %54 = vector.load %arg4[%c0_21, %c0_22] : memref<128x256xbf16, #tpu.memory_space<vmem>>, vector<128x256xbf16>
    %cst_23 = arith.constant dense<0.000000e+00> : vector<128x256xf32>
    %55 = tpu.matmul %53, %54, %cst_23 {dimension_numbers = #tpu.dot_dimension_numbers<[1], [0], [0], [1], [0, 0, 1, 1], [], []>} : vector<128x128xbf16>, vector<128x256xbf16>, vector<128x256xf32> -> vector<128x256xf32>
    %56 = vector.extract_strided_slice %55 {offsets = [0, 0], sizes = [128, 128], strides = [1, 1]} : vector<128x256xf32> to vector<128x128xf32>
    %57 = vector.broadcast %3 : vector<1x128xf32> to vector<128x128xf32>
    %58 = arith.addf %56, %57 : vector<128x128xf32>
    %59 = math.tanh %58 : vector<128x128xf32>
    %60 = vector.extract_strided_slice %55 {offsets = [0, 128], sizes = [128, 128], strides = [1, 1]} : vector<128x256xf32> to vector<128x128xf32>
    %61 = vector.broadcast %4 : vector<1x128xf32> to vector<128x128xf32>
    %62 = arith.addf %60, %61 : vector<128x128xf32>
    %cst_24 = arith.constant 0.000000e+00 : f32
    %63 = vector.broadcast %cst_24 : f32 to vector<128x128xf32>
    %64 = arith.maximumf %62, %63 : vector<128x128xf32>
    %65 = vector.broadcast %5 : vector<1x128xf32> to vector<128x128xf32>
    %66 = arith.mulf %59, %65 : vector<128x128xf32>
    %cst_25 = arith.constant dense<0.000000e+00> : vector<128xf32>
    %67 = vector.multi_reduction <add>, %66, %cst_25 [1] : vector<128x128xf32> to vector<128xf32>
    %68 = vector.shape_cast %67 : vector<128xf32> to vector<128x1xf32>
    %69 = vector.broadcast %6 : vector<1x1xf32> to vector<128x1xf32>
    %70 = arith.addf %68, %69 : vector<128x1xf32>
    %cst_26 = arith.constant 0.000000e+00 : f32
    %71 = vector.broadcast %cst_26 : f32 to vector<128x1xf32>
    %72 = arith.subf %71, %70 : vector<128x1xf32>
    %cst_27 = arith.constant 0.000000e+00 : f32
    %73 = vector.broadcast %cst_27 : f32 to vector<128x1xf32>
    %74 = arith.maximumf %72, %73 : vector<128x1xf32>
    %75 = math.absf %70 : vector<128x1xf32>
    %cst_28 = arith.constant 0.000000e+00 : f32
    %76 = vector.broadcast %cst_28 : f32 to vector<128x1xf32>
    %77 = arith.subf %76, %75 : vector<128x1xf32>
    %78 = math.exp %77 : vector<128x1xf32>
    %79 = math.log1p %78 : vector<128x1xf32>
    %80 = arith.addf %74, %79 : vector<128x1xf32>
    %81 = arith.truncf %64 : vector<128x128xf32> to vector<128x128xbf16>
    %c0_29 = arith.constant 0 : index
    %c0_30 = arith.constant 0 : index
    %82 = vector.load %arg5[%c0_29, %c0_30] : memref<128x128xbf16, #tpu.memory_space<vmem>>, vector<128x128xbf16>
    %cst_31 = arith.constant dense<0.000000e+00> : vector<128x128xf32>
    %83 = tpu.matmul %81, %82, %cst_31 {dimension_numbers = #tpu.dot_dimension_numbers<[1], [0], [0], [1], [0, 0, 1, 1], [], []>} : vector<128x128xbf16>, vector<128x128xbf16>, vector<128x128xf32> -> vector<128x128xf32>
    %84 = vector.broadcast %7 : vector<1x128xf32> to vector<128x128xf32>
    %85 = arith.addf %83, %84 : vector<128x128xf32>
    %cst_32 = arith.constant dense<0xFF800000> : vector<128xf32>
    %86 = vector.multi_reduction <maximumf>, %85, %cst_32 [1] : vector<128x128xf32> to vector<128xf32>
    %87 = vector.shape_cast %86 : vector<128xf32> to vector<128x1xf32>
    %88 = vector.broadcast %87 : vector<128x1xf32> to vector<128x128xf32>
    %89 = arith.subf %85, %88 : vector<128x128xf32>
    %90 = math.exp %89 : vector<128x128xf32>
    %cst_33 = arith.constant dense<0.000000e+00> : vector<128xf32>
    %91 = vector.multi_reduction <add>, %90, %cst_33 [1] : vector<128x128xf32> to vector<128xf32>
    %92 = vector.shape_cast %91 : vector<128xf32> to vector<128x1xf32>
    %93 = math.log %92 : vector<128x1xf32>
    %94 = arith.addf %87, %93 : vector<128x1xf32>
    %95 = tpu.iota {dimensions = array<i32: 1>} : vector<128x128xi32>
    %c0_34 = arith.constant 0 : index
    %c0_35 = arith.constant 0 : index
    %96 = vector.load %arg2[%c0_34, %c0_35] : memref<128x1xi32, #tpu.memory_space<vmem>>, vector<128x1xi32>
    %97 = vector.broadcast %96 : vector<128x1xi32> to vector<128x128xi32>
    %98 = arith.cmpi eq, %95, %97 : vector<128x128xi32>
    %99 = arith.extui %98 : vector<128x128xi1> to vector<128x128xi32>
    %100 = arith.sitofp %99 : vector<128x128xi32> to vector<128x128xf32>
    %101 = arith.mulf %100, %85 : vector<128x128xf32>
    %cst_36 = arith.constant dense<0.000000e+00> : vector<128xf32>
    %102 = vector.multi_reduction <add>, %101, %cst_36 [1] : vector<128x128xf32> to vector<128xf32>
    %103 = vector.shape_cast %102 : vector<128xf32> to vector<128x1xf32>
    %104 = arith.subf %94, %103 : vector<128x1xf32>
    %105 = tpu.iota {dimensions = array<i32: 1>} : vector<128x128xi32>
    %c0_i32 = arith.constant 0 : i32
    %106 = vector.broadcast %c0_i32 : i32 to vector<128x128xi32>
    %107 = arith.cmpi eq, %105, %106 : vector<128x128xi32>
    %cst_37 = arith.constant 0.000000e+00 : f32
    %108 = vector.shape_cast %104 : vector<128x1xf32> to vector<128x1xf32>
    %109 = vector.broadcast %108 : vector<128x1xf32> to vector<128x128xf32>
    %110 = vector.broadcast %cst_37 : f32 to vector<128x128xf32>
    %111 = arith.select %107, %109, %110 : vector<128x128xi1>, vector<128x128xf32>
    %c1_i32 = arith.constant 1 : i32
    %112 = vector.broadcast %c1_i32 : i32 to vector<128x128xi32>
    %113 = arith.cmpi eq, %105, %112 : vector<128x128xi32>
    %cst_38 = arith.constant 0.000000e+00 : f32
    %114 = vector.shape_cast %80 : vector<128x1xf32> to vector<128x1xf32>
    %115 = vector.broadcast %114 : vector<128x1xf32> to vector<128x128xf32>
    %116 = vector.broadcast %cst_38 : f32 to vector<128x128xf32>
    %117 = arith.select %113, %115, %116 : vector<128x128xi1>, vector<128x128xf32>
    %118 = arith.addf %111, %117 : vector<128x128xf32>
    %c0_39 = arith.constant 0 : index
    %c0_40 = arith.constant 0 : index
    %119 = vector.load %arg8[%c0_39, %c0_40] : memref<128x128xf32, #tpu.memory_space<vmem>>, vector<128x128xf32>
    tpu.vector_store %arg8[%c0_39, %c0_40], %118 {strides = array<i32>} : memref<128x128xf32, #tpu.memory_space<vmem>>, vector<128x128xf32>,
    return
  }
  func.func @transform_0(%arg0: i32) -> (i32, i32) {
    %c0_i32 = arith.constant 0 : i32
    %c0_i32_0 = arith.constant 0 : i32
    return %arg0, %c0_i32 : i32, i32
  }
  func.func @transform_1(%arg0: i32) -> (i32, i32) {
    %c0_i32 = arith.constant 0 : i32
    %c0_i32_0 = arith.constant 0 : i32
    return %arg0, %c0_i32 : i32, i32
  }
  func.func @transform_2(%arg0: i32) -> (i32, i32) {
    %c0_i32 = arith.constant 0 : i32
    %c0_i32_0 = arith.constant 0 : i32
    %c0_i32_1 = arith.constant 0 : i32
    return %c0_i32, %c0_i32_0 : i32, i32
  }
  func.func @transform_3(%arg0: i32) -> (i32, i32) {
    %c0_i32 = arith.constant 0 : i32
    %c0_i32_0 = arith.constant 0 : i32
    %c0_i32_1 = arith.constant 0 : i32
    return %c0_i32, %c0_i32_0 : i32, i32
  }
  func.func @transform_4(%arg0: i32) -> (i32, i32) {
    %c0_i32 = arith.constant 0 : i32
    %c0_i32_0 = arith.constant 0 : i32
    %c0_i32_1 = arith.constant 0 : i32
    return %c0_i32, %c0_i32_0 : i32, i32
  }
  func.func @transform_5(%arg0: i32) -> (i32, i32) {
    %c0_i32 = arith.constant 0 : i32
    %c0_i32_0 = arith.constant 0 : i32
    %c0_i32_1 = arith.constant 0 : i32
    return %c0_i32, %c0_i32_0 : i32, i32
  }
  func.func @transform_6(%arg0: i32) -> (i32, i32) {
    %c0_i32 = arith.constant 0 : i32
    %c0_i32_0 = arith.constant 0 : i32
    return %arg0, %c0_i32 : i32, i32
  }
  func.func @transform_7(%arg0: i32) -> (i32, i32) {
    %c0_i32 = arith.constant 0 : i32
    %c0_i32_0 = arith.constant 0 : i32
    return %arg0, %c0_i32 : i32, i32
  }
}

</mosaic_0001>

<llo_original>
// kernel: _env_forward_jit.1
$region0: #{_env_forward_jit.1}
  #allocation0 [shape = 'u32[]', space=smem, size = 0x4, offset = 0x4, fixed_abs, tag = 'smem constant byte address 0x4 - core index']
  #allocation1 [shape = 'u32[72,128]{1,0:T(1,128)}', space=vmem, size = 0x9000, scoped, tag = 'internal scratch']
  %s0 = inlined_call_operand.vmem [shape: f32[128,16], index: 0, kind: input, shape index: {}]
  %s1 = inlined_call_operand.vmem [shape: s32[128,1], index: 1, kind: input, shape index: {}]
  %s2 = inlined_call_operand.vmem [shape: bf16[16,128], index: 2, kind: input, shape index: {}]
  %s3 = inlined_call_operand.vmem [shape: bf16[128,256], index: 3, kind: input, shape index: {}]
  %s4 = inlined_call_operand.vmem [shape: bf16[128,128], index: 4, kind: input, shape index: {}]
  %s5 = inlined_call_operand.vmem [shape: f32[8,128], index: 5, kind: input, shape index: {}]
  %s6 = inlined_call_operand.hbm [shape: f32[128,128], index: 6, kind: output, shape index: {0}]
  %s7 = inlined_call_operand.vmem [shape: f32[128,128], index: 7, kind: output, shape index: {1}]
  %8 = xla_tuple %s6, %s7
  %s9 = sld [smem:[#allocation0]]
  $region42: #{_env_forward_jit.1} parent=0
    _
  %s11 = ssub.s32 1, %s9
  %s12 = scalar_select 0, %s11, %s9
  $region1: #{_env_forward_jit.1} parent=0
    #allocation2 [shape = 'u8[65536]{0}', space=vmem, size = 0x10000, scoped, tag = 'output window, operand 0, single buffered']
    #allocation3 [shape = 's32[1]{0}', space=sflag, size = 0x4, scoped, tag = 'scoped memory for _env_forward_jit.1']
    %13 = vsyncpa [#allocation3], 0
    // Predicated region
    $region2: #{_env_forward_jit.1} parent=1 // pred_check
      _
    $region3: #{_env_forward_jit.1} parent=1 // pred_check_branch
      %15 = sbr.rel (0) target = $region5
    $region4: #{_env_forward_jit.1} parent=1 // pred_region
      _
    $region5: #{_env_forward_jit.1} parent=1 // pred_fallthru
      _
    // Predicated region
    $region6: #{_env_forward_jit.1} parent=1 // pred_check
      _
    $region7: #{_env_forward_jit.1} parent=1 // pred_check_branch
      %17 = sbr.rel (0) target = $region9
    $region8: #{_env_forward_jit.1} parent=1 // pred_region
      _
    $region9: #{_env_forward_jit.1} parent=1 // pred_fallthru
      _
    // Predicated region
    $region10: #{_env_forward_jit.1} parent=1 // pred_check
      _
    $region11: #{_env_forward_jit.1} parent=1 // pred_check_branch
      %19 = sbr.rel (0) target = $region13
    $region12: #{_env_forward_jit.1} parent=1 // pred_region
      _
    $region13: #{_env_forward_jit.1} parent=1 // pred_fallthru
      _
    // Predicated region
    $region14: #{_env_forward_jit.1} parent=1 // pred_check
      _
    $region15: #{_env_forward_jit.1} parent=1 // pred_check_branch
      %21 = sbr.rel (0) target = $region17
    $region16: #{_env_forward_jit.1} parent=1 // pred_region
      _
    $region17: #{_env_forward_jit.1} parent=1 // pred_fallthru
      _
    // Predicated region
    $region18: #{_env_forward_jit.1} parent=1 // pred_check
      _
    $region19: #{_env_forward_jit.1} parent=1 // pred_check_branch
      %23 = sbr.rel (0) target = $region21
    $region20: #{_env_forward_jit.1} parent=1 // pred_region
      _
    $region21: #{_env_forward_jit.1} parent=1 // pred_fallthru
      _
    // Predicated region
    $region22: #{_env_forward_jit.1} parent=1 // pred_check
      _
    $region23: #{_env_forward_jit.1} parent=1 // pred_check_branch
      %25 = sbr.rel (0) target = $region25
    $region24: #{_env_forward_jit.1} parent=1 // pred_region
      _
    $region25: #{_env_forward_jit.1} parent=1 // pred_fallthru
      _
    %v27 = vld [vmem:[%s0] sm:$0xff]
    %v28 = vld [vmem:[%s0 + $0x8] sm:$0xff]
    %v29 = vld [vmem:[%s0 + $0x10] sm:$0xff]
    %v30 = vld [vmem:[%s0 + $0x18] sm:$0xff]
    %v31 = vld [vmem:[%s0 + $0x20] sm:$0xff]
    %v32 = vld [vmem:[%s0 + $0x28] sm:$0xff]
    %v33 = vld [vmem:[%s0 + $0x30] sm:$0xff]
    %v34 = vld [vmem:[%s0 + $0x38] sm:$0xff]
    %v35 = vld [vmem:[%s0 + $0x40] sm:$0xff]
    %v36 = vld [vmem:[%s0 + $0x48] sm:$0xff]
    %v37 = vld [vmem:[%s0 + $0x50] sm:$0xff]
    %v38 = vld [vmem:[%s0 + $0x58] sm:$0xff]
    %v39 = vld [vmem:[%s0 + $0x60] sm:$0xff]
    %v40 = vld [vmem:[%s0 + $0x68] sm:$0xff]
    %v41 = vld [vmem:[%s0 + $0x70] sm:$0xff]
    %v42 = vld [vmem:[%s0 + $0x78] sm:$0xff]
    %v43 = vpack.c.bf16 %v28, %v27
    %v44 = vpack.c.bf16 %v30, %v29
    %v45 = vpack.c.bf16 %v32, %v31
    %v46 = vpack.c.bf16 %v34, %v33
    %v47 = vpack.c.bf16 %v36, %v35
    %v48 = vpack.c.bf16 %v38, %v37
    %v49 = vpack.c.bf16 %v40, %v39
    %v50 = vpack.c.bf16 %v42, %v41
    %v51 = vld [vmem:[%s5] sm:$0x1]
    %v52 = vld [vmem:[%s5 + $0x1] sm:$0x1]
    %v53 = vld [vmem:[%s5 + $0x2] sm:$0x1]
    %v54 = vld [vmem:[%s5 + $0x3] sm:$0x1]
    %v55 = vld [vmem:[%s5 + $0x4] sm:$0x1]
    %v56 = vld [vmem:[%s5 + $0x5] sm:$0x1]
    %v57 = vld [vmem:[%s2] sm:$0xf]
    %v58 = vld [vmem:[%s2 + $0x4] sm:$0xf]
    %v59 = vperm.slane %v51, 0
    %v62 = vunpack.c.l.b16 %v57
    %v63 = vunpack.c.l.b16 %v58
    %v64 = vpack.c.b16 %v63, %v62
    %vm66 = vcmask 130048
    %v68 = vsel %vm66, %v43, 0
    %v71 = vsel %vm66, %v44, 0
    %v74 = vsel %vm66, %v45, 0
    %v77 = vsel %vm66, %v46, 0
    %v80 = vsel %vm66, %v47, 0
    %v83 = vsel %vm66, %v48, 0
    %v86 = vsel %vm66, %v49, 0
    %v89 = vsel %vm66, %v50, 0
    %91 = vmatpush.bf16.msra.mxu0 0
    %92 = vmatpush.bf16.msra.mxu0 0
    %93 = vmatpush.bf16.msra.mxu0 0
    %94 = vmatpush.bf16.msra.mxu0 0
    %95 = vmatpush.bf16.msra.mxu0 0
    %96 = vmatpush.bf16.msra.mxu0 0
    %97 = vmatpush.bf16.msra.mxu0 0
    %98 = vmatpush.bf16.msra.mxu0 %v64
    %99 = vmatmul.bf16.gmra.mxu0 %v68
    %v100 = vpop.f32.mrf.mxu0
    %v101 = vadd.f32 %v59, %v100
    %v102 = vpop.f32.mrf.mxu0
    %v103 = vadd.f32 %v59, %v102
    %104 = vmatmul.bf16.gmra.mxu0 %v71
    %v105 = vpop.f32.mrf.mxu0
    %v106 = vadd.f32 %v59, %v105
    %v107 = vpop.f32.mrf.mxu0
    %v108 = vadd.f32 %v59, %v107
    %109 = vmatmul.bf16.gmra.mxu0 %v74
    %v110 = vpop.f32.mrf.mxu0
    %v111 = vadd.f32 %v59, %v110
    %v112 = vpop.f32.mrf.mxu0
    %v113 = vadd.f32 %v59, %v112
    %114 = vmatmul.bf16.gmra.mxu0 %v77
    %v115 = vpop.f32.mrf.mxu0
    %v116 = vadd.f32 %v59, %v115
    %v117 = vpop.f32.mrf.mxu0
    %v118 = vadd.f32 %v59, %v117
    %119 = vmatmul.bf16.gmra.mxu0 %v80
    %v120 = vpop.f32.mrf.mxu0
    %v121 = vadd.f32 %v59, %v120
    %v122 = vpop.f32.mrf.mxu0
    %v123 = vadd.f32 %v59, %v122
    %124 = vmatmul.bf16.gmra.mxu0 %v83
    %v125 = vpop.f32.mrf.mxu0
    %v126 = vadd.f32 %v59, %v125
    %v127 = vpop.f32.mrf.mxu0
    %v128 = vadd.f32 %v59, %v127
    %129 = vmatmul.bf16.gmra.mxu0 %v86
    %v130 = vpop.f32.mrf.mxu0
    %v131 = vadd.f32 %v59, %v130
    %v132 = vpop.f32.mrf.mxu0
    %v133 = vadd.f32 %v59, %v132
    %134 = vmatmul.bf16.gmra.mxu0 %v89
    %v135 = vpop.f32.mrf.mxu0
    %v136 = vadd.f32 %v59, %v135
    %v137 = vpop.f32.mrf.mxu0
    %v138 = vadd.f32 %v59, %v137
    %139 = vdwg.mxu0
    %v140 = vlaneseq
    %v141 = vand.u32 %v140, 127
    %vm142 = vcmp.lt.s32.totalorder %v141, 32
    %vm143 = vcmp.ge.s32.totalorder %v141, 96
    %v144 = vsel %vm142, %v101, -1e+30
    %v145 = vsel %vm142, %v103, -1e+30
    %v146 = vsel %vm142, %v106, -1e+30
    %v147 = vsel %vm142, %v108, -1e+30
    %v148 = vsel %vm142, %v111, -1e+30
    %v149 = vsel %vm142, %v113, -1e+30
    %v150 = vsel %vm142, %v116, -1e+30
    %v151 = vsel %vm142, %v118, -1e+30
    %v152 = vsel %vm142, %v121, -1e+30
    %v153 = vsel %vm142, %v123, -1e+30
    %v154 = vsel %vm142, %v126, -1e+30
    %v155 = vsel %vm142, %v128, -1e+30
    %v156 = vsel %vm142, %v131, -1e+30
    %v157 = vsel %vm142, %v133, -1e+30
    %v158 = vsel %vm142, %v136, -1e+30
    %v159 = vsel %vm142, %v138, -1e+30
    %160 = vmax.xlane.f32.xlu0 %v144
    %v161 = vpop.xlane.xlu0 %160
    %162 = vmax.xlane.f32.xlu0 %v145
    %v163 = vpop.xlane.xlu0 %162
    %164 = vmax.xlane.f32.xlu0 %v146
    %v165 = vpop.xlane.xlu0 %164
    %166 = vmax.xlane.f32.xlu0 %v147
    %v167 = vpop.xlane.xlu0 %166
    %168 = vmax.xlane.f32.xlu0 %v148
    %v169 = vpop.xlane.xlu0 %168
    %170 = vmax.xlane.f32.xlu0 %v149
    %v171 = vpop.xlane.xlu0 %170
    %172 = vmax.xlane.f32.xlu0 %v150
    %v173 = vpop.xlane.xlu0 %172
    %174 = vmax.xlane.f32.xlu0 %v151
    %v175 = vpop.xlane.xlu0 %174
    %176 = vmax.xlane.f32.xlu0 %v152
    %v177 = vpop.xlane.xlu0 %176
    %178 = vmax.xlane.f32.xlu0 %v153
    %v179 = vpop.xlane.xlu0 %178
    %180 = vmax.xlane.f32.xlu0 %v154
    %v181 = vpop.xlane.xlu0 %180
    %182 = vmax.xlane.f32.xlu0 %v155
    %v183 = vpop.xlane.xlu0 %182
    %184 = vmax.xlane.f32.xlu0 %v156
    %v185 = vpop.xlane.xlu0 %184
    %186 = vmax.xlane.f32.xlu0 %v157
    %v187 = vpop.xlane.xlu0 %186
    %188 = vmax.xlane.f32.xlu0 %v158
    %v189 = vpop.xlane.xlu0 %188
    %190 = vmax.xlane.f32.xlu0 %v159
    %v191 = vpop.xlane.xlu0 %190
    %v192 = vsub.f32 %v144, %v161
    %v193 = vsub.f32 %v145, %v163
    %v194 = vsub.f32 %v146, %v165
    %v195 = vsub.f32 %v147, %v167
    %v196 = vsub.f32 %v148, %v169
    %v197 = vsub.f32 %v149, %v171
    %v198 = vsub.f32 %v150, %v173
    %v199 = vsub.f32 %v151, %v175
    %v200 = vsub.f32 %v152, %v177
    %v201 = vsub.f32 %v153, %v179
    %v202 = vsub.f32 %v154, %v181
    %v203 = vsub.f32 %v155, %v183
    %v204 = vsub.f32 %v156, %v185
    %v205 = vsub.f32 %v157, %v187
    %v206 = vsub.f32 %v158, %v189
    %v207 = vsub.f32 %v159, %v191
    %v208 = vmul.f32 %v192, 1.442695
    %v209 = vpow.pop %v208
    %v210 = vmul.f32 %v193, 1.442695
    %v211 = vpow.pop %v210
    %v212 = vmul.f32 %v194, 1.442695
    %v213 = vpow.pop %v212
    %v214 = vmul.f32 %v195, 1.442695
    %v215 = vpow.pop %v214
    %v216 = vmul.f32 %v196, 1.442695
    %v217 = vpow.pop %v216
    %v218 = vmul.f32 %v197, 1.442695
    %v219 = vpow.pop %v218
    %v220 = vmul.f32 %v198, 1.442695
    %v221 = vpow.pop %v220
    %v222 = vmul.f32 %v199, 1.442695
    %v223 = vpow.pop %v222
    %v224 = vmul.f32 %v200, 1.442695
    %v225 = vpow.pop %v224
    %v226 = vmul.f32 %v201, 1.442695
    %v227 = vpow.pop %v226
    %v228 = vmul.f32 %v202, 1.442695
    %v229 = vpow.pop %v228
    %v230 = vmul.f32 %v203, 1.442695
    %v231 = vpow.pop %v230
    %v232 = vmul.f32 %v204, 1.442695
    %v233 = vpow.pop %v232
    %v234 = vmul.f32 %v205, 1.442695
    %v235 = vpow.pop %v234
    %v236 = vmul.f32 %v206, 1.442695
    %v237 = vpow.pop %v236
    %v238 = vmul.f32 %v207, 1.442695
    %v239 = vpow.pop %v238
    %v240 = vsel %vm142, %v209, 0.0
    %v241 = vsel %vm142, %v211, 0.0
    %v242 = vsel %vm142, %v213, 0.0
    %v243 = vsel %vm142, %v215, 0.0
    %v244 = vsel %vm142, %v217, 0.0
    %v245 = vsel %vm142, %v219, 0.0
    %v246 = vsel %vm142, %v221, 0.0
    %v247 = vsel %vm142, %v223, 0.0
    %v248 = vsel %vm142, %v225, 0.0
    %v249 = vsel %vm142, %v227, 0.0
    %v250 = vsel %vm142, %v229, 0.0
    %v251 = vsel %vm142, %v231, 0.0
    %v252 = vsel %vm142, %v233, 0.0
    %v253 = vsel %vm142, %v235, 0.0
    %v254 = vsel %vm142, %v237, 0.0
    %v255 = vsel %vm142, %v239, 0.0
    %256 = vadd.xlane.f32.xlu0 %v240
    %v257 = vpop.xlane.xlu0 %256
    %258 = vadd.xlane.f32.xlu0 %v241
    %v259 = vpop.xlane.xlu0 %258
    %260 = vadd.xlane.f32.xlu0 %v242
    %v261 = vpop.xlane.xlu0 %260
    %262 = vadd.xlane.f32.xlu0 %v243
    %v263 = vpop.xlane.xlu0 %262
    %264 = vadd.xlane.f32.xlu0 %v244
    %v265 = vpop.xlane.xlu0 %264
    %266 = vadd.xlane.f32.xlu0 %v245
    %v267 = vpop.xlane.xlu0 %266
    %268 = vadd.xlane.f32.xlu0 %v246
    %v269 = vpop.xlane.xlu0 %268
    %270 = vadd.xlane.f32.xlu0 %v247
    %v271 = vpop.xlane.xlu0 %270
    %272 = vadd.xlane.f32.xlu0 %v248
    %v273 = vpop.xlane.xlu0 %272
    %274 = vadd.xlane.f32.xlu0 %v249
    %v275 = vpop.xlane.xlu0 %274
    %276 = vadd.xlane.f32.xlu0 %v250
    %v277 = vpop.xlane.xlu0 %276
    %278 = vadd.xlane.f32.xlu0 %v251
    %v279 = vpop.xlane.xlu0 %278
    %280 = vadd.xlane.f32.xlu0 %v252
    %v281 = vpop.xlane.xlu0 %280
    %282 = vadd.xlane.f32.xlu0 %v253
    %v283 = vpop.xlane.xlu0 %282
    %284 = vadd.xlane.f32.xlu0 %v254
    %v285 = vpop.xlane.xlu0 %284
    %286 = vadd.xlane.f32.xlu0 %v255
    %v287 = vpop.xlane.xlu0 %286
    %v288 = vrcp.pop %v257
    %v289 = vrcp.pop %v259
    %v290 = vrcp.pop %v261
    %v291 = vrcp.pop %v263
    %v292 = vrcp.pop %v265
    %v293 = vrcp.pop %v267
    %v294 = vrcp.pop %v269
    %v295 = vrcp.pop %v271
    %v296 = vrcp.pop %v273
    %v297 = vrcp.pop %v275
    %v298 = vrcp.pop %v277
    %v299 = vrcp.pop %v279
    %v300 = vrcp.pop %v281
    %v301 = vrcp.pop %v283
    %v302 = vrcp.pop %v285
    %v303 = vrcp.pop %v287
    %v304 = vmul.f32 %v257, %v288
    %v305 = vmul.f32 %v259, %v289
    %v306 = vmul.f32 %v261, %v290
    %v307 = vmul.f32 %v263, %v291
    %v308 = vmul.f32 %v265, %v292
    %v309 = vmul.f32 %v267, %v293
    %v310 = vmul.f32 %v269, %v294
    %v311 = vmul.f32 %v271, %v295
    %v312 = vmul.f32 %v273, %v296
    %v313 = vmul.f32 %v275, %v297
    %v314 = vmul.f32 %v277, %v298
    %v315 = vmul.f32 %v279, %v299
    %v316 = vmul.f32 %v281, %v300
    %v317 = vmul.f32 %v283, %v301
    %v318 = vmul.f32 %v285, %v302
    %v319 = vmul.f32 %v287, %v303
    %v320 = vsub.f32 2.0, %v304
    %v321 = vsub.f32 2.0, %v305
    %v322 = vsub.f32 2.0, %v306
    %v323 = vsub.f32 2.0, %v307
    %v324 = vsub.f32 2.0, %v308
    %v325 = vsub.f32 2.0, %v309
    %v326 = vsub.f32 2.0, %v310
    %v327 = vsub.f32 2.0, %v311
    %v328 = vsub.f32 2.0, %v312
    %v329 = vsub.f32 2.0, %v313
    %v330 = vsub.f32 2.0, %v314
    %v331 = vsub.f32 2.0, %v315
    %v332 = vsub.f32 2.0, %v316
    %v333 = vsub.f32 2.0, %v317
    %v334 = vsub.f32 2.0, %v318
    %v335 = vsub.f32 2.0, %v319
    %v336 = vmul.f32 %v288, %v320
    %v337 = vmul.f32 %v289, %v321
    %v338 = vmul.f32 %v290, %v322
    %v339 = vmul.f32 %v291, %v323
    %v340 = vmul.f32 %v292, %v324
    %v341 = vmul.f32 %v293, %v325
    %v342 = vmul.f32 %v294, %v326
    %v343 = vmul.f32 %v295, %v327
    %v344 = vmul.f32 %v296, %v328
    %v345 = vmul.f32 %v297, %v329
    %v346 = vmul.f32 %v298, %v330
    %v347 = vmul.f32 %v299, %v331
    %v348 = vmul.f32 %v300, %v332
    %v349 = vmul.f32 %v301, %v333
    %v350 = vmul.f32 %v302, %v334
    %v351 = vmul.f32 %v303, %v335
    %v352 = vmul.f32 %v240, %v336
    %v353 = vmul.f32 %v241, %v337
    %v354 = vmul.f32 %v242, %v338
    %v355 = vmul.f32 %v243, %v339
    %v356 = vmul.f32 %v244, %v340
    %v357 = vmul.f32 %v245, %v341
    %v358 = vmul.f32 %v246, %v342
    %v359 = vmul.f32 %v247, %v343
    %v360 = vmul.f32 %v248, %v344
    %v361 = vmul.f32 %v249, %v345
    %v362 = vmul.f32 %v250, %v346
    %v363 = vmul.f32 %v251, %v347
    %v364 = vmul.f32 %v252, %v348
    %v365 = vmul.f32 %v253, %v349
    %v366 = vmul.f32 %v254, %v350
    %v367 = vmul.f32 %v255, %v351
    %v368 = vand.u32 2147483647, %v101
    %v369 = vand.u32 2147483647, %v103
    %v370 = vand.u32 2147483647, %v106
    %v371 = vand.u32 2147483647, %v108
    %v372 = vand.u32 2147483647, %v111
    %v373 = vand.u32 2147483647, %v113
    %v374 = vand.u32 2147483647, %v116
    %v375 = vand.u32 2147483647, %v118
    %v376 = vand.u32 2147483647, %v121
    %v377 = vand.u32 2147483647, %v123
    %v378 = vand.u32 2147483647, %v126
    %v379 = vand.u32 2147483647, %v128
    %v380 = vand.u32 2147483647, %v131
    %v381 = vand.u32 2147483647, %v133
    %v382 = vand.u32 2147483647, %v136
    %v383 = vand.u32 2147483647, %v138
    %v384 = vsub.f32 0.0, %v368
    %v385 = vsub.f32 0.0, %v369
    %v386 = vsub.f32 0.0, %v370
    %v387 = vsub.f32 0.0, %v371
    %v388 = vsub.f32 0.0, %v372
    %v389 = vsub.f32 0.0, %v373
    %v390 = vsub.f32 0.0, %v374
    %v391 = vsub.f32 0.0, %v375
    %v392 = vsub.f32 0.0, %v376
    %v393 = vsub.f32 0.0, %v377
    %v394 = vsub.f32 0.0, %v378
    %v395 = vsub.f32 0.0, %v379
    %v396 = vsub.f32 0.0, %v380
    %v397 = vsub.f32 0.0, %v381
    %v398 = vsub.f32 0.0, %v382
    %v399 = vsub.f32 0.0, %v383
    %v400 = vmul.f32 %v384, 1.442695
    %v401 = vpow.pop %v400
    %v402 = vmul.f32 %v385, 1.442695
    %v403 = vpow.pop %v402
    %v404 = vmul.f32 %v386, 1.442695
    %v405 = vpow.pop %v404
    %v406 = vmul.f32 %v387, 1.442695
    %v407 = vpow.pop %v406
    %v408 = vmul.f32 %v388, 1.442695
    %v409 = vpow.pop %v408
    %v410 = vmul.f32 %v389, 1.442695
    %v411 = vpow.pop %v410
    %v412 = vmul.f32 %v390, 1.442695
    %v413 = vpow.pop %v412
    %v414 = vmul.f32 %v391, 1.442695
    %v415 = vpow.pop %v414
    %v416 = vmul.f32 %v392, 1.442695
    %v417 = vpow.pop %v416
    %v418 = vmul.f32 %v393, 1.442695
    %v419 = vpow.pop %v418
    %v420 = vmul.f32 %v394, 1.442695
    %v421 = vpow.pop %v420
    %v422 = vmul.f32 %v395, 1.442695
    %v423 = vpow.pop %v422
    %v424 = vmul.f32 %v396, 1.442695
    %v425 = vpow.pop %v424
    %v426 = vmul.f32 %v397, 1.442695
    %v427 = vpow.pop %v426
    %v428 = vmul.f32 %v398, 1.442695
    %v429 = vpow.pop %v428
    %v430 = vmul.f32 %v399, 1.442695
    %v431 = vpow.pop %v430
    %v432 = vadd.f32 %v401, 1.0
    %v433 = vadd.f32 %v403, 1.0
    %v434 = vadd.f32 %v405, 1.0
    %v435 = vadd.f32 %v407, 1.0
    %v436 = vadd.f32 %v409, 1.0
    %v437 = vadd.f32 %v411, 1.0
    %v438 = vadd.f32 %v413, 1.0
    %v439 = vadd.f32 %v415, 1.0
    %v440 = vadd.f32 %v417, 1.0
    %v441 = vadd.f32 %v419, 1.0
    %v442 = vadd.f32 %v421, 1.0
    %v443 = vadd.f32 %v423, 1.0
    %v444 = vadd.f32 %v425, 1.0
    %v445 = vadd.f32 %v427, 1.0
    %v446 = vadd.f32 %v429, 1.0
    %v447 = vadd.f32 %v431, 1.0
    %v448 = vrcp.pop %v432
    %v449 = vrcp.pop %v433
    %v450 = vrcp.pop %v434
    %v451 = vrcp.pop %v435
    %v452 = vrcp.pop %v436
    %v453 = vrcp.pop %v437
    %v454 = vrcp.pop %v438
    %v455 = vrcp.pop %v439
    %v456 = vrcp.pop %v440
    %v457 = vrcp.pop %v441
    %v458 = vrcp.pop %v442
    %v459 = vrcp.pop %v443
    %v460 = vrcp.pop %v444
    %v461 = vrcp.pop %v445
    %v462 = vrcp.pop %v446
    %v463 = vrcp.pop %v447
    %v464 = vmul.f32 %v432, %v448
    %v465 = vmul.f32 %v433, %v449
    %v466 = vmul.f32 %v434, %v450
    %v467 = vmul.f32 %v435, %v451
    %v468 = vmul.f32 %v436, %v452
    %v469 = vmul.f32 %v437, %v453
    %v470 = vmul.f32 %v438, %v454
    %v471 = vmul.f32 %v439, %v455
    %v472 = vmul.f32 %v440, %v456
    %v473 = vmul.f32 %v441, %v457
    %v474 = vmul.f32 %v442, %v458
    %v475 = vmul.f32 %v443, %v459
    %v476 = vmul.f32 %v444, %v460
    %v477 = vmul.f32 %v445, %v461
    %v478 = vmul.f32 %v446, %v462
    %v479 = vmul.f32 %v447, %v463
    %v480 = vsub.f32 2.0, %v464
    %v481 = vsub.f32 2.0, %v465
    %v482 = vsub.f32 2.0, %v466
    %v483 = vsub.f32 2.0, %v467
    %v484 = vsub.f32 2.0, %v468
    %v485 = vsub.f32 2.0, %v469
    %v486 = vsub.f32 2.0, %v470
    %v487 = vsub.f32 2.0, %v471
    %v488 = vsub.f32 2.0, %v472
    %v489 = vsub.f32 2.0, %v473
    %v490 = vsub.f32 2.0, %v474
    %v491 = vsub.f32 2.0, %v475
    %v492 = vsub.f32 2.0, %v476
    %v493 = vsub.f32 2.0, %v477
    %v494 = vsub.f32 2.0, %v478
    %v495 = vsub.f32 2.0, %v479
    %v496 = vmul.f32 %v448, %v480
    %v497 = vmul.f32 %v449, %v481
    %v498 = vmul.f32 %v450, %v482
    %v499 = vmul.f32 %v451, %v483
    %v500 = vmul.f32 %v452, %v484
    %v501 = vmul.f32 %v453, %v485
    %v502 = vmul.f32 %v454, %v486
    %v503 = vmul.f32 %v455, %v487
    %v504 = vmul.f32 %v456, %v488
    %v505 = vmul.f32 %v457, %v489
    %v506 = vmul.f32 %v458, %v490
    %v507 = vmul.f32 %v459, %v491
    %v508 = vmul.f32 %v460, %v492
    %v509 = vmul.f32 %v461, %v493
    %v510 = vmul.f32 %v462, %v494
    %v511 = vmul.f32 %v463, %v495
    %vm512 = vcmp.ge.f32.partialorder %v101, 0.0
    %vm513 = vcmp.ge.f32.partialorder %v103, 0.0
    %vm514 = vcmp.ge.f32.partialorder %v106, 0.0
    %vm515 = vcmp.ge.f32.partialorder %v108, 0.0
    %vm516 = vcmp.ge.f32.partialorder %v111, 0.0
    %vm517 = vcmp.ge.f32.partialorder %v113, 0.0
    %vm518 = vcmp.ge.f32.partialorder %v116, 0.0
    %vm519 = vcmp.ge.f32.partialorder %v118, 0.0
    %vm520 = vcmp.ge.f32.partialorder %v121, 0.0
    %vm521 = vcmp.ge.f32.partialorder %v123, 0.0
    %vm522 = vcmp.ge.f32.partialorder %v126, 0.0
    %vm523 = vcmp.ge.f32.partialorder %v128, 0.0
    %vm524 = vcmp.ge.f32.partialorder %v131, 0.0
    %vm525 = vcmp.ge.f32.partialorder %v133, 0.0
    %vm526 = vcmp.ge.f32.partialorder %v136, 0.0
    %vm527 = vcmp.ge.f32.partialorder %v138, 0.0
    %v528 = vmul.f32 %v401, %v496
    %v529 = vmul.f32 %v403, %v497
    %v530 = vmul.f32 %v405, %v498
    %v531 = vmul.f32 %v407, %v499
    %v532 = vmul.f32 %v409, %v500
    %v533 = vmul.f32 %v411, %v501
    %v534 = vmul.f32 %v413, %v502
    %v535 = vmul.f32 %v415, %v503
    %v536 = vmul.f32 %v417, %v504
    %v537 = vmul.f32 %v419, %v505
    %v538 = vmul.f32 %v421, %v506
    %v539 = vmul.f32 %v423, %v507
    %v540 = vmul.f32 %v425, %v508
    %v541 = vmul.f32 %v427, %v509
    %v542 = vmul.f32 %v429, %v510
    %v543 = vmul.f32 %v431, %v511
    %v544 = vsel %vm512, %v496, %v528
    %v545 = vsel %vm513, %v497, %v529
    %v546 = vsel %vm514, %v498, %v530
    %v547 = vsel %vm515, %v499, %v531
    %v548 = vsel %vm516, %v500, %v532
    %v549 = vsel %vm517, %v501, %v533
    %v550 = vsel %vm518, %v502, %v534
    %v551 = vsel %vm519, %v503, %v535
    %v552 = vsel %vm520, %v504, %v536
    %v553 = vsel %vm521, %v505, %v537
    %v554 = vsel %vm522, %v506, %v538
    %v555 = vsel %vm523, %v507, %v539
    %v556 = vsel %vm524, %v508, %v540
    %v557 = vsel %vm525, %v509, %v541
    %v558 = vsel %vm526, %v510, %v542
    %v559 = vsel %vm527, %v511, %v543
    %v560 = vsel %vm143, %v544, %v101
    %v561 = vsel %vm143, %v545, %v103
    %v562 = vsel %vm143, %v546, %v106
    %v563 = vsel %vm143, %v547, %v108
    %v564 = vsel %vm143, %v548, %v111
    %v565 = vsel %vm143, %v549, %v113
    %v566 = vsel %vm143, %v550, %v116
    %v567 = vsel %vm143, %v551, %v118
    %v568 = vsel %vm143, %v552, %v121
    %v569 = vsel %vm143, %v553, %v123
    %v570 = vsel %vm143, %v554, %v126
    %v571 = vsel %vm143, %v555, %v128
    %v572 = vsel %vm143, %v556, %v131
    %v573 = vsel %vm143, %v557, %v133
    %v574 = vsel %vm143, %v558, %v136
    %v575 = vsel %vm143, %v559, %v138
    %v576 = vsel %vm142, %v352, %v560
    %v577 = vsel %vm142, %v353, %v561
    %v578 = vsel %vm142, %v354, %v562
    %v579 = vsel %vm142, %v355, %v563
    %v580 = vsel %vm142, %v356, %v564
    %v581 = vsel %vm142, %v357, %v565
    %v582 = vsel %vm142, %v358, %v566
    %v583 = vsel %vm142, %v359, %v567
    %v584 = vsel %vm142, %v360, %v568
    %v585 = vsel %vm142, %v361, %v569
    %v586 = vsel %vm142, %v362, %v570
    %v587 = vsel %vm142, %v363, %v571
    %v588 = vsel %vm142, %v364, %v572
    %v589 = vsel %vm142, %v365, %v573
    %v590 = vsel %vm142, %v366, %v574
    %v591 = vsel %vm142, %v367, %v575
    %592 = vst [vmem:[#allocation2] sm:$0xff] %v576
    %593 = vst [vmem:[#allocation2 + $0x8] sm:$0xff] %v577
    %594 = vst [vmem:[#allocation2 + $0x10] sm:$0xff] %v578
    %595 = vst [vmem:[#allocation2 + $0x18] sm:$0xff] %v579
    %596 = vst [vmem:[#allocation2 + $0x20] sm:$0xff] %v580
    %597 = vst [vmem:[#allocation2 + $0x28] sm:$0xff] %v581
    %598 = vst [vmem:[#allocation2 + $0x30] sm:$0xff] %v582
    %599 = vst [vmem:[#allocation2 + $0x38] sm:$0xff] %v583
    %600 = vst [vmem:[#allocation2 + $0x40] sm:$0xff] %v584
    %601 = vst [vmem:[#allocation2 + $0x48] sm:$0xff] %v585
    %602 = vst [vmem:[#allocation2 + $0x50] sm:$0xff] %v586
    %603 = vst [vmem:[#allocation2 + $0x58] sm:$0xff] %v587
    %604 = vst [vmem:[#allocation2 + $0x60] sm:$0xff] %v588
    %605 = vst [vmem:[#allocation2 + $0x68] sm:$0xff] %v589
    %606 = vst [vmem:[#allocation2 + $0x70] sm:$0xff] %v590
    %607 = vst [vmem:[#allocation2 + $0x78] sm:$0xff] %v591
    %v608 = vpack.c.bf16 %v577, %v576
    %v609 = vpack.c.bf16 %v579, %v578
    %v610 = vpack.c.bf16 %v581, %v580
    %v611 = vpack.c.bf16 %v583, %v582
    %v612 = vpack.c.bf16 %v585, %v584
    %v613 = vpack.c.bf16 %v587, %v586
    %v614 = vpack.c.bf16 %v589, %v588
    %v615 = vpack.c.bf16 %v591, %v590
    %v616 = vld [vmem:[%s3] sm:$0xff]
    %v617 = vld [vmem:[%s3 + $0x8] sm:$0xff]
    %v618 = vld [vmem:[%s3 + $0x10] sm:$0xff]
    %v619 = vld [vmem:[%s3 + $0x18] sm:$0xff]
    %v620 = vld [vmem:[%s3 + $0x20] sm:$0xff]
    %v621 = vld [vmem:[%s3 + $0x28] sm:$0xff]
    %v622 = vld [vmem:[%s3 + $0x30] sm:$0xff]
    %v623 = vld [vmem:[%s3 + $0x38] sm:$0xff]
    %v624 = vld [vmem:[%s3 + $0x40] sm:$0xff]
    %v625 = vld [vmem:[%s3 + $0x48] sm:$0xff]
    %v626 = vld [vmem:[%s3 + $0x50] sm:$0xff]
    %v627 = vld [vmem:[%s3 + $0x58] sm:$0xff]
    %v628 = vld [vmem:[%s3 + $0x60] sm:$0xff]
    %v629 = vld [vmem:[%s3 + $0x68] sm:$0xff]
    %v630 = vld [vmem:[%s3 + $0x70] sm:$0xff]
    %v631 = vld [vmem:[%s3 + $0x78] sm:$0xff]
    %v648 = vunpack.c.l.b16 %v616
    %v649 = vunpack.c.h.b16 %v616
    %v650 = vunpack.c.l.b16 %v617
    %v651 = vunpack.c.h.b16 %v617
    %v652 = vunpack.c.l.b16 %v618
    %v653 = vunpack.c.h.b16 %v618
    %v654 = vunpack.c.l.b16 %v619
    %v655 = vunpack.c.h.b16 %v619
    %v656 = vunpack.c.l.b16 %v620
    %v657 = vunpack.c.h.b16 %v620
    %v658 = vunpack.c.l.b16 %v621
    %v659 = vunpack.c.h.b16 %v621
    %v660 = vunpack.c.l.b16 %v622
    %v661 = vunpack.c.h.b16 %v622
    %v662 = vunpack.c.l.b16 %v623
    %v663 = vunpack.c.h.b16 %v623
    %v664 = vunpack.c.l.b16 %v624
    %v665 = vunpack.c.h.b16 %v624
    %v666 = vunpack.c.l.b16 %v625
    %v667 = vunpack.c.h.b16 %v625
    %v668 = vunpack.c.l.b16 %v626
    %v669 = vunpack.c.h.b16 %v626
    %v670 = vunpack.c.l.b16 %v627
    %v671 = vunpack.c.h.b16 %v627
    %v672 = vunpack.c.l.b16 %v628
    %v673 = vunpack.c.h.b16 %v628
    %v674 = vunpack.c.l.b16 %v629
    %v675 = vunpack.c.h.b16 %v629
    %v676 = vunpack.c.l.b16 %v630
    %v677 = vunpack.c.h.b16 %v630
    %v678 = vunpack.c.l.b16 %v631
    %v679 = vunpack.c.h.b16 %v631
    %v680 = vpack.c.b16 %v650, %v648
    %v681 = vpack.c.b16 %v651, %v649
    %v682 = vpack.c.b16 %v654, %v652
    %v683 = vpack.c.b16 %v655, %v653
    %v684 = vpack.c.b16 %v658, %v656
    %v685 = vpack.c.b16 %v659, %v657
    %v686 = vpack.c.b16 %v662, %v660
    %v687 = vpack.c.b16 %v663, %v661
    %v688 = vpack.c.b16 %v666, %v664
    %v689 = vpack.c.b16 %v667, %v665
    %v690 = vpack.c.b16 %v670, %v668
    %v691 = vpack.c.b16 %v671, %v669
    %v692 = vpack.c.b16 %v674, %v672
    %v693 = vpack.c.b16 %v675, %v673
    %v694 = vpack.c.b16 %v678, %v676
    %v695 = vpack.c.b16 %v679, %v677
    %712 = vmatpush.bf16.msra.mxu0 %v694
    %713 = vmatpush.bf16.msra.mxu0 %v692
    %714 = vmatpush.bf16.msra.mxu0 %v690
    %715 = vmatpush.bf16.msra.mxu0 %v688
    %716 = vmatpush.bf16.msra.mxu0 %v686
    %717 = vmatpush.bf16.msra.mxu0 %v684
    %718 = vmatpush.bf16.msra.mxu0 %v682
    %719 = vmatpush.bf16.msra.mxu0 %v680
    %720 = vmatmul.bf16.gmra.mxu0 %v608
    %v721 = vpop.f32.mrf.mxu0
    %v722 = vadd.f32 0.0, %v721
    %v723 = vpop.f32.mrf.mxu0
    %v724 = vadd.f32 0.0, %v723
    %725 = vmatmul.bf16.gmra.mxu0 %v609
    %v726 = vpop.f32.mrf.mxu0
    %v727 = vadd.f32 0.0, %v726
    %v728 = vpop.f32.mrf.mxu0
    %v729 = vadd.f32 0.0, %v728
    %730 = vmatmul.bf16.gmra.mxu0 %v610
    %v731 = vpop.f32.mrf.mxu0
    %v732 = vadd.f32 0.0, %v731
    %v733 = vpop.f32.mrf.mxu0
    %v734 = vadd.f32 0.0, %v733
    %735 = vmatmul.bf16.gmra.mxu0 %v611
    %v736 = vpop.f32.mrf.mxu0
    %v737 = vadd.f32 0.0, %v736
    %v738 = vpop.f32.mrf.mxu0
    %v739 = vadd.f32 0.0, %v738
    %740 = vmatmul.bf16.gmra.mxu0 %v612
    %v741 = vpop.f32.mrf.mxu0
    %v742 = vadd.f32 0.0, %v741
    %v743 = vpop.f32.mrf.mxu0
    %v744 = vadd.f32 0.0, %v743
    %745 = vmatmul.bf16.gmra.mxu0 %v613
    %v746 = vpop.f32.mrf.mxu0
    %v747 = vadd.f32 0.0, %v746
    %v748 = vpop.f32.mrf.mxu0
    %v749 = vadd.f32 0.0, %v748
    %750 = vmatmul.bf16.gmra.mxu0 %v614
    %v751 = vpop.f32.mrf.mxu0
    %v752 = vadd.f32 0.0, %v751
    %v753 = vpop.f32.mrf.mxu0
    %v754 = vadd.f32 0.0, %v753
    %755 = vmatmul.bf16.gmra.mxu0 %v615
    %v756 = vpop.f32.mrf.mxu0
    %v757 = vadd.f32 0.0, %v756
    %v758 = vpop.f32.mrf.mxu0
    %v759 = vadd.f32 0.0, %v758
    %760 = vdwg.mxu0
    %761 = vmatpush.bf16.msra.mxu0 %v695
    %762 = vmatpush.bf16.msra.mxu0 %v693
    %763 = vmatpush.bf16.msra.mxu0 %v691
    %764 = vmatpush.bf16.msra.mxu0 %v689
    %765 = vmatpush.bf16.msra.mxu0 %v687
    %766 = vmatpush.bf16.msra.mxu0 %v685
    %767 = vmatpush.bf16.msra.mxu0 %v683
    %768 = vmatpush.bf16.msra.mxu0 %v681
    %769 = vmatmul.bf16.gmra.mxu0 %v608
    %v770 = vpop.f32.mrf.mxu0
    %v771 = vadd.f32 0.0, %v770
    %v772 = vpop.f32.mrf.mxu0
    %v773 = vadd.f32 0.0, %v772
    %774 = vmatmul.bf16.gmra.mxu0 %v609
    %v775 = vpop.f32.mrf.mxu0
    %v776 = vadd.f32 0.0, %v775
    %v777 = vpop.f32.mrf.mxu0
    %v778 = vadd.f32 0.0, %v777
    %779 = vmatmul.bf16.gmra.mxu0 %v610
    %v780 = vpop.f32.mrf.mxu0
    %v781 = vadd.f32 0.0, %v780
    %v782 = vpop.f32.mrf.mxu0
    %v783 = vadd.f32 0.0, %v782
    %784 = vmatmul.bf16.gmra.mxu0 %v611
    %v785 = vpop.f32.mrf.mxu0
    %v786 = vadd.f32 0.0, %v785
    %v787 = vpop.f32.mrf.mxu0
    %v788 = vadd.f32 0.0, %v787
    %789 = vmatmul.bf16.gmra.mxu0 %v612
    %v790 = vpop.f32.mrf.mxu0
    %v791 = vadd.f32 0.0, %v790
    %v792 = vpop.f32.mrf.mxu0
    %v793 = vadd.f32 0.0, %v792
    %794 = vmatmul.bf16.gmra.mxu0 %v613
    %v795 = vpop.f32.mrf.mxu0
    %v796 = vadd.f32 0.0, %v795
    %v797 = vpop.f32.mrf.mxu0
    %v798 = vadd.f32 0.0, %v797
    %799 = vmatmul.bf16.gmra.mxu0 %v614
    %v800 = vpop.f32.mrf.mxu0
    %v801 = vadd.f32 0.0, %v800
    %v802 = vpop.f32.mrf.mxu0
    %v803 = vadd.f32 0.0, %v802
    %804 = vmatmul.bf16.gmra.mxu0 %v615
    %v805 = vpop.f32.mrf.mxu0
    %v806 = vadd.f32 0.0, %v805
    %v807 = vpop.f32.mrf.mxu0
    %v808 = vadd.f32 0.0, %v807
    %809 = vdwg.mxu0
    %v810 = vperm.slane %v52, 0
    %v811 = vadd.f32 %v722, %v810
    %v812 = vadd.f32 %v724, %v810
    %v813 = vadd.f32 %v727, %v810
    %v814 = vadd.f32 %v729, %v810
    %v815 = vadd.f32 %v732, %v810
    %v816 = vadd.f32 %v734, %v810
    %v817 = vadd.f32 %v737, %v810
    %v818 = vadd.f32 %v739, %v810
    %v819 = vadd.f32 %v742, %v810
    %v820 = vadd.f32 %v744, %v810
    %v821 = vadd.f32 %v747, %v810
    %v822 = vadd.f32 %v749, %v810
    %v823 = vadd.f32 %v752, %v810
    %v824 = vadd.f32 %v754, %v810
    %v825 = vadd.f32 %v757, %v810
    %v826 = vadd.f32 %v759, %v810
    %v827 = vtanh.pop %v811
    %v828 = vtanh.pop %v812
    %v829 = vtanh.pop %v813
    %v830 = vtanh.pop %v814
    %v831 = vtanh.pop %v815
    %v832 = vtanh.pop %v816
    %v833 = vtanh.pop %v817
    %v834 = vtanh.pop %v818
    %v835 = vtanh.pop %v819
    %v836 = vtanh.pop %v820
    %v837 = vtanh.pop %v821
    %v838 = vtanh.pop %v822
    %v839 = vtanh.pop %v823
    %v840 = vtanh.pop %v824
    %v841 = vtanh.pop %v825
    %v842 = vtanh.pop %v826
    %v843 = vperm.slane %v53, 0
    %v844 = vadd.f32 %v771, %v843
    %v845 = vadd.f32 %v773, %v843
    %v846 = vadd.f32 %v776, %v843
    %v847 = vadd.f32 %v778, %v843
    %v848 = vadd.f32 %v781, %v843
    %v849 = vadd.f32 %v783, %v843
    %v850 = vadd.f32 %v786, %v843
    %v851 = vadd.f32 %v788, %v843
    %v852 = vadd.f32 %v791, %v843
    %v853 = vadd.f32 %v793, %v843
    %v854 = vadd.f32 %v796, %v843
    %v855 = vadd.f32 %v798, %v843
    %v856 = vadd.f32 %v801, %v843
    %v857 = vadd.f32 %v803, %v843
    %v858 = vadd.f32 %v806, %v843
    %v859 = vadd.f32 %v808, %v843
    %v860 = vmax.f32 %v844, 0.0
    %v861 = vmax.f32 %v845, 0.0
    %v862 = vmax.f32 %v846, 0.0
    %v863 = vmax.f32 %v847, 0.0
    %v864 = vmax.f32 %v848, 0.0
    %v865 = vmax.f32 %v849, 0.0
    %v866 = vmax.f32 %v850, 0.0
    %v867 = vmax.f32 %v851, 0.0
    %v868 = vmax.f32 %v852, 0.0
    %v869 = vmax.f32 %v853, 0.0
    %v870 = vmax.f32 %v854, 0.0
    %v871 = vmax.f32 %v855, 0.0
    %v872 = vmax.f32 %v856, 0.0
    %v873 = vmax.f32 %v857, 0.0
    %v874 = vmax.f32 %v858, 0.0
    %v875 = vmax.f32 %v859, 0.0
    %v876 = vperm.slane %v54, 0
    %v877 = vmul.f32 %v827, %v876
    %v878 = vmul.f32 %v828, %v876
    %v879 = vmul.f32 %v829, %v876
    %v880 = vmul.f32 %v830, %v876
    %v881 = vmul.f32 %v831, %v876
    %v882 = vmul.f32 %v832, %v876
    %v883 = vmul.f32 %v833, %v876
    %v884 = vmul.f32 %v834, %v876
    %v885 = vmul.f32 %v835, %v876
    %v886 = vmul.f32 %v836, %v876
    %v887 = vmul.f32 %v837, %v876
    %v888 = vmul.f32 %v838, %v876
    %v889 = vmul.f32 %v839, %v876
    %v890 = vmul.f32 %v840, %v876
    %v891 = vmul.f32 %v841, %v876
    %v892 = vmul.f32 %v842, %v876
    %893 = vadd.xlane.f32.xlu0 %v877
    %v894 = vpop.xlane.xlu0 %893
    %895 = vadd.xlane.f32.xlu0 %v878
    %v896 = vpop.xlane.xlu0 %895
    %897 = vadd.xlane.f32.xlu0 %v879
    %v898 = vpop.xlane.xlu0 %897
    %899 = vadd.xlane.f32.xlu0 %v880
    %v900 = vpop.xlane.xlu0 %899
    %901 = vadd.xlane.f32.xlu0 %v881
    %v902 = vpop.xlane.xlu0 %901
    %903 = vadd.xlane.f32.xlu0 %v882
    %v904 = vpop.xlane.xlu0 %903
    %905 = vadd.xlane.f32.xlu0 %v883
    %v906 = vpop.xlane.xlu0 %905
    %907 = vadd.xlane.f32.xlu0 %v884
    %v908 = vpop.xlane.xlu0 %907
    %909 = vadd.xlane.f32.xlu0 %v885
    %v910 = vpop.xlane.xlu0 %909
    %911 = vadd.xlane.f32.xlu0 %v886
    %v912 = vpop.xlane.xlu0 %911
    %913 = vadd.xlane.f32.xlu0 %v887
    %v914 = vpop.xlane.xlu0 %913
    %915 = vadd.xlane.f32.xlu0 %v888
    %v916 = vpop.xlane.xlu0 %915
    %917 = vadd.xlane.f32.xlu0 %v889
    %v918 = vpop.xlane.xlu0 %917
    %919 = vadd.xlane.f32.xlu0 %v890
    %v920 = vpop.xlane.xlu0 %919
    %921 = vadd.xlane.f32.xlu0 %v891
    %v922 = vpop.xlane.xlu0 %921
    %923 = vadd.xlane.f32.xlu0 %v892
    %v924 = vpop.xlane.xlu0 %923
    %v925 = vperm.slane %v55, 0
    %v926 = vadd.f32 %v894, %v925
    %v927 = vadd.f32 %v896, %v925
    %v928 = vadd.f32 %v898, %v925
    %v929 = vadd.f32 %v900, %v925
    %v930 = vadd.f32 %v902, %v925
    %v931 = vadd.f32 %v904, %v925
    %v932 = vadd.f32 %v906, %v925
    %v933 = vadd.f32 %v908, %v925
    %v934 = vadd.f32 %v910, %v925
    %v935 = vadd.f32 %v912, %v925
    %v936 = vadd.f32 %v914, %v925
    %v937 = vadd.f32 %v916, %v925
    %v938 = vadd.f32 %v918, %v925
    %v939 = vadd.f32 %v920, %v925
    %v940 = vadd.f32 %v922, %v925
    %v941 = vadd.f32 %v924, %v925
    %v942 = vsub.f32 0.0, %v926
    %v943 = vsub.f32 0.0, %v927
    %v944 = vsub.f32 0.0, %v928
    %v945 = vsub.f32 0.0, %v929
    %v946 = vsub.f32 0.0, %v930
    %v947 = vsub.f32 0.0, %v931
    %v948 = vsub.f32 0.0, %v932
    %v949 = vsub.f32 0.0, %v933
    %v950 = vsub.f32 0.0, %v934
    %v951 = vsub.f32 0.0, %v935
    %v952 = vsub.f32 0.0, %v936
    %v953 = vsub.f32 0.0, %v937
    %v954 = vsub.f32 0.0, %v938
    %v955 = vsub.f32 0.0, %v939
    %v956 = vsub.f32 0.0, %v940
    %v957 = vsub.f32 0.0, %v941
    %v958 = vmax.f32 %v942, 0.0
    %v959 = vmax.f32 %v943, 0.0
    %v960 = vmax.f32 %v944, 0.0
    %v961 = vmax.f32 %v945, 0.0
    %v962 = vmax.f32 %v946, 0.0
    %v963 = vmax.f32 %v947, 0.0
    %v964 = vmax.f32 %v948, 0.0
    %v965 = vmax.f32 %v949, 0.0
    %v966 = vmax.f32 %v950, 0.0
    %v967 = vmax.f32 %v951, 0.0
    %v968 = vmax.f32 %v952, 0.0
    %v969 = vmax.f32 %v953, 0.0
    %v970 = vmax.f32 %v954, 0.0
    %v971 = vmax.f32 %v955, 0.0
    %v972 = vmax.f32 %v956, 0.0
    %v973 = vmax.f32 %v957, 0.0
    %v974 = vand.u32 2147483647, %v926
    %v975 = vand.u32 2147483647, %v927
    %v976 = vand.u32 2147483647, %v928
    %v977 = vand.u32 2147483647, %v929
    %v978 = vand.u32 2147483647, %v930
    %v979 = vand.u32 2147483647, %v931
    %v980 = vand.u32 2147483647, %v932
    %v981 = vand.u32 2147483647, %v933
    %v982 = vand.u32 2147483647, %v934
    %v983 = vand.u32 2147483647, %v935
    %v984 = vand.u32 2147483647, %v936
    %v985 = vand.u32 2147483647, %v937
    %v986 = vand.u32 2147483647, %v938
    %v987 = vand.u32 2147483647, %v939
    %v988 = vand.u32 2147483647, %v940
    %v989 = vand.u32 2147483647, %v941
    %v990 = vsub.f32 0.0, %v974
    %v991 = vsub.f32 0.0, %v975
    %v992 = vsub.f32 0.0, %v976
    %v993 = vsub.f32 0.0, %v977
    %v994 = vsub.f32 0.0, %v978
    %v995 = vsub.f32 0.0, %v979
    %v996 = vsub.f32 0.0, %v980
    %v997 = vsub.f32 0.0, %v981
    %v998 = vsub.f32 0.0, %v982
    %v999 = vsub.f32 0.0, %v983
    %v1000 = vsub.f32 0.0, %v984
    %v1001 = vsub.f32 0.0, %v985
    %v1002 = vsub.f32 0.0, %v986
    %v1003 = vsub.f32 0.0, %v987
    %v1004 = vsub.f32 0.0, %v988
    %v1005 = vsub.f32 0.0, %v989
    %v1006 = vmul.f32 %v990, 1.442695
    %v1007 = vpow.pop %v1006
    %v1008 = vmul.f32 %v991, 1.442695
    %v1009 = vpow.pop %v1008
    %v1010 = vmul.f32 %v992, 1.442695
    %v1011 = vpow.pop %v1010
    %v1012 = vmul.f32 %v993, 1.442695
    %v1013 = vpow.pop %v1012
    %v1014 = vmul.f32 %v994, 1.442695
    %v1015 = vpow.pop %v1014
    %v1016 = vmul.f32 %v995, 1.442695
    %v1017 = vpow.pop %v1016
    %v1018 = vmul.f32 %v996, 1.442695
    %v1019 = vpow.pop %v1018
    %v1020 = vmul.f32 %v997, 1.442695
    %v1021 = vpow.pop %v1020
    %v1022 = vmul.f32 %v998, 1.442695
    %v1023 = vpow.pop %v1022
    %v1024 = vmul.f32 %v999, 1.442695
    %v1025 = vpow.pop %v1024
    %v1026 = vmul.f32 %v1000, 1.442695
    %v1027 = vpow.pop %v1026
    %v1028 = vmul.f32 %v1001, 1.442695
    %v1029 = vpow.pop %v1028
    %v1030 = vmul.f32 %v1002, 1.442695
    %v1031 = vpow.pop %v1030
    %v1032 = vmul.f32 %v1003, 1.442695
    %v1033 = vpow.pop %v1032
    %v1034 = vmul.f32 %v1004, 1.442695
    %v1035 = vpow.pop %v1034
    %v1036 = vmul.f32 %v1005, 1.442695
    %v1037 = vpow.pop %v1036
    %v1038 = vadd.f32 %v1007, 1.0
    %v1039 = vlog2.pop %v1038
    %v1040 = vmul.f32 %v1039, 0.6931472
    %v1041 = vmul.f32 -0.5, %v1007
    %v1042 = vadd.f32 %v1041, 1.0
    %v1043 = vmul.f32 %v1042, %v1007
    %v1044 = vand.u32 2147483647, %v1007
    %vm1045 = vcmp.lt.f32.partialorder %v1044, 0.0004427343
    %v1046 = vsel %vm1045, %v1043, %v1040
    %v1047 = vadd.f32 %v1009, 1.0
    %v1048 = vlog2.pop %v1047
    %v1049 = vmul.f32 %v1048, 0.6931472
    %v1050 = vmul.f32 -0.5, %v1009
    %v1051 = vadd.f32 %v1050, 1.0
    %v1052 = vmul.f32 %v1051, %v1009
    %v1053 = vand.u32 2147483647, %v1009
    %vm1054 = vcmp.lt.f32.partialorder %v1053, 0.0004427343
    %v1055 = vsel %vm1054, %v1052, %v1049
    %v1056 = vadd.f32 %v1011, 1.0
    %v1057 = vlog2.pop %v1056
    %v1058 = vmul.f32 %v1057, 0.6931472
    %v1059 = vmul.f32 -0.5, %v1011
    %v1060 = vadd.f32 %v1059, 1.0
    %v1061 = vmul.f32 %v1060, %v1011
    %v1062 = vand.u32 2147483647, %v1011
    %vm1063 = vcmp.lt.f32.partialorder %v1062, 0.0004427343
    %v1064 = vsel %vm1063, %v1061, %v1058
    %v1065 = vadd.f32 %v1013, 1.0
    %v1066 = vlog2.pop %v1065
    %v1067 = vmul.f32 %v1066, 0.6931472
    %v1068 = vmul.f32 -0.5, %v1013
    %v1069 = vadd.f32 %v1068, 1.0
    %v1070 = vmul.f32 %v1069, %v1013
    %v1071 = vand.u32 2147483647, %v1013
    %vm1072 = vcmp.lt.f32.partialorder %v1071, 0.0004427343
    %v1073 = vsel %vm1072, %v1070, %v1067
    %v1074 = vadd.f32 %v1015, 1.0
    %v1075 = vlog2.pop %v1074
    %v1076 = vmul.f32 %v1075, 0.6931472
    %v1077 = vmul.f32 -0.5, %v1015
    %v1078 = vadd.f32 %v1077, 1.0
    %v1079 = vmul.f32 %v1078, %v1015
    %v1080 = vand.u32 2147483647, %v1015
    %vm1081 = vcmp.lt.f32.partialorder %v1080, 0.0004427343
    %v1082 = vsel %vm1081, %v1079, %v1076
    %v1083 = vadd.f32 %v1017, 1.0
    %v1084 = vlog2.pop %v1083
    %v1085 = vmul.f32 %v1084, 0.6931472
    %v1086 = vmul.f32 -0.5, %v1017
    %v1087 = vadd.f32 %v1086, 1.0
    %v1088 = vmul.f32 %v1087, %v1017
    %v1089 = vand.u32 2147483647, %v1017
    %vm1090 = vcmp.lt.f32.partialorder %v1089, 0.0004427343
    %v1091 = vsel %vm1090, %v1088, %v1085
    %v1092 = vadd.f32 %v1019, 1.0
    %v1093 = vlog2.pop %v1092
    %v1094 = vmul.f32 %v1093, 0.6931472
    %v1095 = vmul.f32 -0.5, %v1019
    %v1096 = vadd.f32 %v1095, 1.0
    %v1097 = vmul.f32 %v1096, %v1019
    %v1098 = vand.u32 2147483647, %v1019
    %vm1099 = vcmp.lt.f32.partialorder %v1098, 0.0004427343
    %v1100 = vsel %vm1099, %v1097, %v1094
    %v1101 = vadd.f32 %v1021, 1.0
    %v1102 = vlog2.pop %v1101
    %v1103 = vmul.f32 %v1102, 0.6931472
    %v1104 = vmul.f32 -0.5, %v1021
    %v1105 = vadd.f32 %v1104, 1.0
    %v1106 = vmul.f32 %v1105, %v1021
    %v1107 = vand.u32 2147483647, %v1021
    %vm1108 = vcmp.lt.f32.partialorder %v1107, 0.0004427343
    %v1109 = vsel %vm1108, %v1106, %v1103
    %v1110 = vadd.f32 %v1023, 1.0
    %v1111 = vlog2.pop %v1110
    %v1112 = vmul.f32 %v1111, 0.6931472
    %v1113 = vmul.f32 -0.5, %v1023
    %v1114 = vadd.f32 %v1113, 1.0
    %v1115 = vmul.f32 %v1114, %v1023
    %v1116 = vand.u32 2147483647, %v1023
    %vm1117 = vcmp.lt.f32.partialorder %v1116, 0.0004427343
    %v1118 = vsel %vm1117, %v1115, %v1112
    %v1119 = vadd.f32 %v1025, 1.0
    %v1120 = vlog2.pop %v1119
    %v1121 = vmul.f32 %v1120, 0.6931472
    %v1122 = vmul.f32 -0.5, %v1025
    %v1123 = vadd.f32 %v1122, 1.0
    %v1124 = vmul.f32 %v1123, %v1025
    %v1125 = vand.u32 2147483647, %v1025
    %vm1126 = vcmp.lt.f32.partialorder %v1125, 0.0004427343
    %v1127 = vsel %vm1126, %v1124, %v1121
    %v1128 = vadd.f32 %v1027, 1.0
    %v1129 = vlog2.pop %v1128
    %v1130 = vmul.f32 %v1129, 0.6931472
    %v1131 = vmul.f32 -0.5, %v1027
    %v1132 = vadd.f32 %v1131, 1.0
    %v1133 = vmul.f32 %v1132, %v1027
    %v1134 = vand.u32 2147483647, %v1027
    %vm1135 = vcmp.lt.f32.partialorder %v1134, 0.0004427343
    %v1136 = vsel %vm1135, %v1133, %v1130
    %v1137 = vadd.f32 %v1029, 1.0
    %v1138 = vlog2.pop %v1137
    %v1139 = vmul.f32 %v1138, 0.6931472
    %v1140 = vmul.f32 -0.5, %v1029
    %v1141 = vadd.f32 %v1140, 1.0
    %v1142 = vmul.f32 %v1141, %v1029
    %v1143 = vand.u32 2147483647, %v1029
    %vm1144 = vcmp.lt.f32.partialorder %v1143, 0.0004427343
    %v1145 = vsel %vm1144, %v1142, %v1139
    %v1146 = vadd.f32 %v1031, 1.0
    %v1147 = vlog2.pop %v1146
    %v1148 = vmul.f32 %v1147, 0.6931472
    %v1149 = vmul.f32 -0.5, %v1031
    %v1150 = vadd.f32 %v1149, 1.0
    %v1151 = vmul.f32 %v1150, %v1031
    %v1152 = vand.u32 2147483647, %v1031
    %vm1153 = vcmp.lt.f32.partialorder %v1152, 0.0004427343
    %v1154 = vsel %vm1153, %v1151, %v1148
    %v1155 = vadd.f32 %v1033, 1.0
    %v1156 = vlog2.pop %v1155
    %v1157 = vmul.f32 %v1156, 0.6931472
    %v1158 = vmul.f32 -0.5, %v1033
    %v1159 = vadd.f32 %v1158, 1.0
    %v1160 = vmul.f32 %v1159, %v1033
    %v1161 = vand.u32 2147483647, %v1033
    %vm1162 = vcmp.lt.f32.partialorder %v1161, 0.0004427343
    %v1163 = vsel %vm1162, %v1160, %v1157
    %v1164 = vadd.f32 %v1035, 1.0
    %v1165 = vlog2.pop %v1164
    %v1166 = vmul.f32 %v1165, 0.6931472
    %v1167 = vmul.f32 -0.5, %v1035
    %v1168 = vadd.f32 %v1167, 1.0
    %v1169 = vmul.f32 %v1168, %v1035
    %v1170 = vand.u32 2147483647, %v1035
    %vm1171 = vcmp.lt.f32.partialorder %v1170, 0.0004427343
    %v1172 = vsel %vm1171, %v1169, %v1166
    %v1173 = vadd.f32 %v1037, 1.0
    %v1174 = vlog2.pop %v1173
    %v1175 = vmul.f32 %v1174, 0.6931472
    %v1176 = vmul.f32 -0.5, %v1037
    %v1177 = vadd.f32 %v1176, 1.0
    %v1178 = vmul.f32 %v1177, %v1037
    %v1179 = vand.u32 2147483647, %v1037
    %vm1180 = vcmp.lt.f32.partialorder %v1179, 0.0004427343
    %v1181 = vsel %vm1180, %v1178, %v1175
    %v1182 = vadd.f32 %v958, %v1046
    %v1183 = vadd.f32 %v959, %v1055
    %v1184 = vadd.f32 %v960, %v1064
    %v1185 = vadd.f32 %v961, %v1073
    %v1186 = vadd.f32 %v962, %v1082
    %v1187 = vadd.f32 %v963, %v1091
    %v1188 = vadd.f32 %v964, %v1100
    %v1189 = vadd.f32 %v965, %v1109
    %v1190 = vadd.f32 %v966, %v1118
    %v1191 = vadd.f32 %v967, %v1127
    %v1192 = vadd.f32 %v968, %v1136
    %v1193 = vadd.f32 %v969, %v1145
    %v1194 = vadd.f32 %v970, %v1154
    %v1195 = vadd.f32 %v971, %v1163
    %v1196 = vadd.f32 %v972, %v1172
    %v1197 = vadd.f32 %v973, %v1181
    %v1198 = vpack.c.bf16 %v861, %v860
    %v1199 = vpack.c.bf16 %v863, %v862
    %v1200 = vpack.c.bf16 %v865, %v864
    %v1201 = vpack.c.bf16 %v867, %v866
    %v1202 = vpack.c.bf16 %v869, %v868
    %v1203 = vpack.c.bf16 %v871, %v870
    %v1204 = vpack.c.bf16 %v873, %v872
    %v1205 = vpack.c.bf16 %v875, %v874
    %v1206 = vld [vmem:[%s4] sm:$0xf]
    %v1207 = vld [vmem:[%s4 + $0x4] sm:$0xf]
    %v1208 = vld [vmem:[%s4 + $0x8] sm:$0xf]
    %v1209 = vld [vmem:[%s4 + $0xc] sm:$0xf]
    %v1210 = vld [vmem:[%s4 + $0x10] sm:$0xf]
    %v1211 = vld [vmem:[%s4 + $0x14] sm:$0xf]
    %v1212 = vld [vmem:[%s4 + $0x18] sm:$0xf]
    %v1213 = vld [vmem:[%s4 + $0x1c] sm:$0xf]
    %v1214 = vld [vmem:[%s4 + $0x20] sm:$0xf]
    %v1215 = vld [vmem:[%s4 + $0x24] sm:$0xf]
    %v1216 = vld [vmem:[%s4 + $0x28] sm:$0xf]
    %v1217 = vld [vmem:[%s4 + $0x2c] sm:$0xf]
    %v1218 = vld [vmem:[%s4 + $0x30] sm:$0xf]
    %v1219 = vld [vmem:[%s4 + $0x34] sm:$0xf]
    %v1220 = vld [vmem:[%s4 + $0x38] sm:$0xf]
    %v1221 = vld [vmem:[%s4 + $0x3c] sm:$0xf]
    %v1222 = vperm.slane %v56, 0
    %v1239 = vunpack.c.l.b16 %v1206
    %v1240 = vunpack.c.l.b16 %v1207
    %v1241 = vunpack.c.l.b16 %v1208
    %v1242 = vunpack.c.l.b16 %v1209
    %v1243 = vunpack.c.l.b16 %v1210
    %v1244 = vunpack.c.l.b16 %v1211
    %v1245 = vunpack.c.l.b16 %v1212
    %v1246 = vunpack.c.l.b16 %v1213
    %v1247 = vunpack.c.l.b16 %v1214
    %v1248 = vunpack.c.l.b16 %v1215
    %v1249 = vunpack.c.l.b16 %v1216
    %v1250 = vunpack.c.l.b16 %v1217
    %v1251 = vunpack.c.l.b16 %v1218
    %v1252 = vunpack.c.l.b16 %v1219
    %v1253 = vunpack.c.l.b16 %v1220
    %v1254 = vunpack.c.l.b16 %v1221
    %v1255 = vpack.c.b16 %v1240, %v1239
    %v1256 = vpack.c.b16 %v1242, %v1241
    %v1257 = vpack.c.b16 %v1244, %v1243
    %v1258 = vpack.c.b16 %v1246, %v1245
    %v1259 = vpack.c.b16 %v1248, %v1247
    %v1260 = vpack.c.b16 %v1250, %v1249
    %v1261 = vpack.c.b16 %v1252, %v1251
    %v1262 = vpack.c.b16 %v1254, %v1253
    %1271 = vmatpush.bf16.msra.mxu0 %v1262
    %1272 = vmatpush.bf16.msra.mxu0 %v1261
    %1273 = vmatpush.bf16.msra.mxu0 %v1260
    %1274 = vmatpush.bf16.msra.mxu0 %v1259
    %1275 = vmatpush.bf16.msra.mxu0 %v1258
    %1276 = vmatpush.bf16.msra.mxu0 %v1257
    %1277 = vmatpush.bf16.msra.mxu0 %v1256
    %1278 = vmatpush.bf16.msra.mxu0 %v1255
    %1279 = vmatmul.bf16.gmra.mxu0 %v1198
    %v1280 = vpop.f32.mrf.mxu0
    %v1281 = vadd.f32 %v1222, %v1280
    %v1282 = vpop.f32.mrf.mxu0
    %v1283 = vadd.f32 %v1222, %v1282
    %1284 = vmatmul.bf16.gmra.mxu0 %v1199
    %v1285 = vpop.f32.mrf.mxu0
    %v1286 = vadd.f32 %v1222, %v1285
    %v1287 = vpop.f32.mrf.mxu0
    %v1288 = vadd.f32 %v1222, %v1287
    %1289 = vmatmul.bf16.gmra.mxu0 %v1200
    %v1290 = vpop.f32.mrf.mxu0
    %v1291 = vadd.f32 %v1222, %v1290
    %v1292 = vpop.f32.mrf.mxu0
    %v1293 = vadd.f32 %v1222, %v1292
    %1294 = vmatmul.bf16.gmra.mxu0 %v1201
    %v1295 = vpop.f32.mrf.mxu0
    %v1296 = vadd.f32 %v1222, %v1295
    %v1297 = vpop.f32.mrf.mxu0
    %v1298 = vadd.f32 %v1222, %v1297
    %1299 = vmatmul.bf16.gmra.mxu0 %v1202
    %v1300 = vpop.f32.mrf.mxu0
    %v1301 = vadd.f32 %v1222, %v1300
    %v1302 = vpop.f32.mrf.mxu0
    %v1303 = vadd.f32 %v1222, %v1302
    %1304 = vmatmul.bf16.gmra.mxu0 %v1203
    %v1305 = vpop.f32.mrf.mxu0
    %v1306 = vadd.f32 %v1222, %v1305
    %v1307 = vpop.f32.mrf.mxu0
    %v1308 = vadd.f32 %v1222, %v1307
    %1309 = vmatmul.bf16.gmra.mxu0 %v1204
    %v1310 = vpop.f32.mrf.mxu0
    %v1311 = vadd.f32 %v1222, %v1310
    %v1312 = vpop.f32.mrf.mxu0
    %v1313 = vadd.f32 %v1222, %v1312
    %1314 = vmatmul.bf16.gmra.mxu0 %v1205
    %v1315 = vpop.f32.mrf.mxu0
    %v1316 = vadd.f32 %v1222, %v1315
    %v1317 = vpop.f32.mrf.mxu0
    %v1318 = vadd.f32 %v1222, %v1317
    %1319 = vdwg.mxu0
    %1320 = vmax.xlane.f32.xlu0 %v1281
    %v1321 = vpop.xlane.xlu0 %1320
    %1322 = vmax.xlane.f32.xlu0 %v1283
    %v1323 = vpop.xlane.xlu0 %1322
    %1324 = vmax.xlane.f32.xlu0 %v1286
    %v1325 = vpop.xlane.xlu0 %1324
    %1326 = vmax.xlane.f32.xlu0 %v1288
    %v1327 = vpop.xlane.xlu0 %1326
    %1328 = vmax.xlane.f32.xlu0 %v1291
    %v1329 = vpop.xlane.xlu0 %1328
    %1330 = vmax.xlane.f32.xlu0 %v1293
    %v1331 = vpop.xlane.xlu0 %1330
    %1332 = vmax.xlane.f32.xlu0 %v1296
    %v1333 = vpop.xlane.xlu0 %1332
    %1334 = vmax.xlane.f32.xlu0 %v1298
    %v1335 = vpop.xlane.xlu0 %1334
    %1336 = vmax.xlane.f32.xlu0 %v1301
    %v1337 = vpop.xlane.xlu0 %1336
    %1338 = vmax.xlane.f32.xlu0 %v1303
    %v1339 = vpop.xlane.xlu0 %1338
    %1340 = vmax.xlane.f32.xlu0 %v1306
    %v1341 = vpop.xlane.xlu0 %1340
    %1342 = vmax.xlane.f32.xlu0 %v1308
    %v1343 = vpop.xlane.xlu0 %1342
    %1344 = vmax.xlane.f32.xlu0 %v1311
    %v1345 = vpop.xlane.xlu0 %1344
    %1346 = vmax.xlane.f32.xlu0 %v1313
    %v1347 = vpop.xlane.xlu0 %1346
    %1348 = vmax.xlane.f32.xlu0 %v1316
    %v1349 = vpop.xlane.xlu0 %1348
    %1350 = vmax.xlane.f32.xlu0 %v1318
    %v1351 = vpop.xlane.xlu0 %1350
    %v1352 = vsub.f32 %v1281, %v1321
    %v1353 = vsub.f32 %v1283, %v1323
    %v1354 = vsub.f32 %v1286, %v1325
    %v1355 = vsub.f32 %v1288, %v1327
    %v1356 = vsub.f32 %v1291, %v1329
    %v1357 = vsub.f32 %v1293, %v1331
    %v1358 = vsub.f32 %v1296, %v1333
    %v1359 = vsub.f32 %v1298, %v1335
    %v1360 = vsub.f32 %v1301, %v1337
    %v1361 = vsub.f32 %v1303, %v1339
    %v1362 = vsub.f32 %v1306, %v1341
    %v1363 = vsub.f32 %v1308, %v1343
    %v1364 = vsub.f32 %v1311, %v1345
    %v1365 = vsub.f32 %v1313, %v1347
    %v1366 = vsub.f32 %v1316, %v1349
    %v1367 = vsub.f32 %v1318, %v1351
    %v1368 = vmul.f32 %v1352, 1.442695
    %v1369 = vpow.pop %v1368
    %v1370 = vmul.f32 %v1353, 1.442695
    %v1371 = vpow.pop %v1370
    %v1372 = vmul.f32 %v1354, 1.442695
    %v1373 = vpow.pop %v1372
    %v1374 = vmul.f32 %v1355, 1.442695
    %v1375 = vpow.pop %v1374
    %v1376 = vmul.f32 %v1356, 1.442695
    %v1377 = vpow.pop %v1376
    %v1378 = vmul.f32 %v1357, 1.442695
    %v1379 = vpow.pop %v1378
    %v1380 = vmul.f32 %v1358, 1.442695
    %v1381 = vpow.pop %v1380
    %v1382 = vmul.f32 %v1359, 1.442695
    %v1383 = vpow.pop %v1382
    %v1384 = vmul.f32 %v1360, 1.442695
    %v1385 = vpow.pop %v1384
    %v1386 = vmul.f32 %v1361, 1.442695
    %v1387 = vpow.pop %v1386
    %v1388 = vmul.f32 %v1362, 1.442695
    %v1389 = vpow.pop %v1388
    %v1390 = vmul.f32 %v1363, 1.442695
    %v1391 = vpow.pop %v1390
    %v1392 = vmul.f32 %v1364, 1.442695
    %v1393 = vpow.pop %v1392
    %v1394 = vmul.f32 %v1365, 1.442695
    %v1395 = vpow.pop %v1394
    %v1396 = vmul.f32 %v1366, 1.442695
    %v1397 = vpow.pop %v1396
    %v1398 = vmul.f32 %v1367, 1.442695
    %v1399 = vpow.pop %v1398
    %1400 = vadd.xlane.f32.xlu0 %v1369
    %v1401 = vpop.xlane.xlu0 %1400
    %1402 = vadd.xlane.f32.xlu0 %v1371
    %v1403 = vpop.xlane.xlu0 %1402
    %1404 = vadd.xlane.f32.xlu0 %v1373
    %v1405 = vpop.xlane.xlu0 %1404
    %1406 = vadd.xlane.f32.xlu0 %v1375
    %v1407 = vpop.xlane.xlu0 %1406
    %1408 = vadd.xlane.f32.xlu0 %v1377
    %v1409 = vpop.xlane.xlu0 %1408
    %1410 = vadd.xlane.f32.xlu0 %v1379
    %v1411 = vpop.xlane.xlu0 %1410
    %1412 = vadd.xlane.f32.xlu0 %v1381
    %v1413 = vpop.xlane.xlu0 %1412
    %1414 = vadd.xlane.f32.xlu0 %v1383
    %v1415 = vpop.xlane.xlu0 %1414
    %1416 = vadd.xlane.f32.xlu0 %v1385
    %v1417 = vpop.xlane.xlu0 %1416
    %1418 = vadd.xlane.f32.xlu0 %v1387
    %v1419 = vpop.xlane.xlu0 %1418
    %1420 = vadd.xlane.f32.xlu0 %v1389
    %v1421 = vpop.xlane.xlu0 %1420
    %1422 = vadd.xlane.f32.xlu0 %v1391
    %v1423 = vpop.xlane.xlu0 %1422
    %1424 = vadd.xlane.f32.xlu0 %v1393
    %v1425 = vpop.xlane.xlu0 %1424
    %1426 = vadd.xlane.f32.xlu0 %v1395
    %v1427 = vpop.xlane.xlu0 %1426
    %1428 = vadd.xlane.f32.xlu0 %v1397
    %v1429 = vpop.xlane.xlu0 %1428
    %1430 = vadd.xlane.f32.xlu0 %v1399
    %v1431 = vpop.xlane.xlu0 %1430
    %v1432 = vlog2.pop %v1401
    %v1433 = vmul.f32 %v1432, 0.6931472
    %v1434 = vlog2.pop %v1403
    %v1435 = vmul.f32 %v1434, 0.6931472
    %v1436 = vlog2.pop %v1405
    %v1437 = vmul.f32 %v1436, 0.6931472
    %v1438 = vlog2.pop %v1407
    %v1439 = vmul.f32 %v1438, 0.6931472
    %v1440 = vlog2.pop %v1409
    %v1441 = vmul.f32 %v1440, 0.6931472
    %v1442 = vlog2.pop %v1411
    %v1443 = vmul.f32 %v1442, 0.6931472
    %v1444 = vlog2.pop %v1413
    %v1445 = vmul.f32 %v1444, 0.6931472
    %v1446 = vlog2.pop %v1415
    %v1447 = vmul.f32 %v1446, 0.6931472
    %v1448 = vlog2.pop %v1417
    %v1449 = vmul.f32 %v1448, 0.6931472
    %v1450 = vlog2.pop %v1419
    %v1451 = vmul.f32 %v1450, 0.6931472
    %v1452 = vlog2.pop %v1421
    %v1453 = vmul.f32 %v1452, 0.6931472
    %v1454 = vlog2.pop %v1423
    %v1455 = vmul.f32 %v1454, 0.6931472
    %v1456 = vlog2.pop %v1425
    %v1457 = vmul.f32 %v1456, 0.6931472
    %v1458 = vlog2.pop %v1427
    %v1459 = vmul.f32 %v1458, 0.6931472
    %v1460 = vlog2.pop %v1429
    %v1461 = vmul.f32 %v1460, 0.6931472
    %v1462 = vlog2.pop %v1431
    %v1463 = vmul.f32 %v1462, 0.6931472
    %v1464 = vadd.f32 %v1321, %v1433
    %v1465 = vadd.f32 %v1323, %v1435
    %v1466 = vadd.f32 %v1325, %v1437
    %v1467 = vadd.f32 %v1327, %v1439
    %v1468 = vadd.f32 %v1329, %v1441
    %v1469 = vadd.f32 %v1331, %v1443
    %v1470 = vadd.f32 %v1333, %v1445
    %v1471 = vadd.f32 %v1335, %v1447
    %v1472 = vadd.f32 %v1337, %v1449
    %v1473 = vadd.f32 %v1339, %v1451
    %v1474 = vadd.f32 %v1341, %v1453
    %v1475 = vadd.f32 %v1343, %v1455
    %v1476 = vadd.f32 %v1345, %v1457
    %v1477 = vadd.f32 %v1347, %v1459
    %v1478 = vadd.f32 %v1349, %v1461
    %v1479 = vadd.f32 %v1351, %v1463
    %v1480 = vld [vmem:[%s1] sm:$0xff]
    %v1481 = vld [vmem:[%s1 + $0x8] sm:$0xff]
    %v1482 = vld [vmem:[%s1 + $0x10] sm:$0xff]
    %v1483 = vld [vmem:[%s1 + $0x18] sm:$0xff]
    %v1484 = vld [vmem:[%s1 + $0x20] sm:$0xff]
    %v1485 = vld [vmem:[%s1 + $0x28] sm:$0xff]
    %v1486 = vld [vmem:[%s1 + $0x30] sm:$0xff]
    %v1487 = vld [vmem:[%s1 + $0x38] sm:$0xff]
    %v1488 = vld [vmem:[%s1 + $0x40] sm:$0xff]
    %v1489 = vld [vmem:[%s1 + $0x48] sm:$0xff]
    %v1490 = vld [vmem:[%s1 + $0x50] sm:$0xff]
    %v1491 = vld [vmem:[%s1 + $0x58] sm:$0xff]
    %v1492 = vld [vmem:[%s1 + $0x60] sm:$0xff]
    %v1493 = vld [vmem:[%s1 + $0x68] sm:$0xff]
    %v1494 = vld [vmem:[%s1 + $0x70] sm:$0xff]
    %v1495 = vld [vmem:[%s1 + $0x78] sm:$0xff]
    %1496 = vset.pattern.permute.xlu0 0
    %1497 = vperm.xlu0 %1496, %v1480
    %v1498 = vpop.permute.xlu0 %1497
    %1499 = vset.pattern.permute.xlu0 0
    %1500 = vperm.xlu0 %1499, %v1481
    %v1501 = vpop.permute.xlu0 %1500
    %1502 = vset.pattern.permute.xlu0 0
    %1503 = vperm.xlu0 %1502, %v1482
    %v1504 = vpop.permute.xlu0 %1503
    %1505 = vset.pattern.permute.xlu0 0
    %1506 = vperm.xlu0 %1505, %v1483
    %v1507 = vpop.permute.xlu0 %1506
    %1508 = vset.pattern.permute.xlu0 0
    %1509 = vperm.xlu0 %1508, %v1484
    %v1510 = vpop.permute.xlu0 %1509
    %1511 = vset.pattern.permute.xlu0 0
    %1512 = vperm.xlu0 %1511, %v1485
    %v1513 = vpop.permute.xlu0 %1512
    %1514 = vset.pattern.permute.xlu0 0
    %1515 = vperm.xlu0 %1514, %v1486
    %v1516 = vpop.permute.xlu0 %1515
    %1517 = vset.pattern.permute.xlu0 0
    %1518 = vperm.xlu0 %1517, %v1487
    %v1519 = vpop.permute.xlu0 %1518
    %1520 = vset.pattern.permute.xlu0 0
    %1521 = vperm.xlu0 %1520, %v1488
    %v1522 = vpop.permute.xlu0 %1521
    %1523 = vset.pattern.permute.xlu0 0
    %1524 = vperm.xlu0 %1523, %v1489
    %v1525 = vpop.permute.xlu0 %1524
    %1526 = vset.pattern.permute.xlu0 0
    %1527 = vperm.xlu0 %1526, %v1490
    %v1528 = vpop.permute.xlu0 %1527
    %1529 = vset.pattern.permute.xlu0 0
    %1530 = vperm.xlu0 %1529, %v1491
    %v1531 = vpop.permute.xlu0 %1530
    %1532 = vset.pattern.permute.xlu0 0
    %1533 = vperm.xlu0 %1532, %v1492
    %v1534 = vpop.permute.xlu0 %1533
    %1535 = vset.pattern.permute.xlu0 0
    %1536 = vperm.xlu0 %1535, %v1493
    %v1537 = vpop.permute.xlu0 %1536
    %1538 = vset.pattern.permute.xlu0 0
    %1539 = vperm.xlu0 %1538, %v1494
    %v1540 = vpop.permute.xlu0 %1539
    %1541 = vset.pattern.permute.xlu0 0
    %1542 = vperm.xlu0 %1541, %v1495
    %v1543 = vpop.permute.xlu0 %1542
    %vm1544 = vcmp.eq.s32.totalorder %v141, %v1498
    %vm1545 = vcmp.eq.s32.totalorder %v141, %v1501
    %vm1546 = vcmp.eq.s32.totalorder %v141, %v1504
    %vm1547 = vcmp.eq.s32.totalorder %v141, %v1507
    %vm1548 = vcmp.eq.s32.totalorder %v141, %v1510
    %vm1549 = vcmp.eq.s32.totalorder %v141, %v1513
    %vm1550 = vcmp.eq.s32.totalorder %v141, %v1516
    %vm1551 = vcmp.eq.s32.totalorder %v141, %v1519
    %vm1552 = vcmp.eq.s32.totalorder %v141, %v1522
    %vm1553 = vcmp.eq.s32.totalorder %v141, %v1525
    %vm1554 = vcmp.eq.s32.totalorder %v141, %v1528
    %vm1555 = vcmp.eq.s32.totalorder %v141, %v1531
    %vm1556 = vcmp.eq.s32.totalorder %v141, %v1534
    %vm1557 = vcmp.eq.s32.totalorder %v141, %v1537
    %vm1558 = vcmp.eq.s32.totalorder %v141, %v1540
    %vm1559 = vcmp.eq.s32.totalorder %v141, %v1543
    %v1560 = vsel %vm1544, 1, 0
    %v1561 = vsel %vm1545, 1, 0
    %v1562 = vsel %vm1546, 1, 0
    %v1563 = vsel %vm1547, 1, 0
    %v1564 = vsel %vm1548, 1, 0
    %v1565 = vsel %vm1549, 1, 0
    %v1566 = vsel %vm1550, 1, 0
    %v1567 = vsel %vm1551, 1, 0
    %v1568 = vsel %vm1552, 1, 0
    %v1569 = vsel %vm1553, 1, 0
    %v1570 = vsel %vm1554, 1, 0
    %v1571 = vsel %vm1555, 1, 0
    %v1572 = vsel %vm1556, 1, 0
    %v1573 = vsel %vm1557, 1, 0
    %v1574 = vsel %vm1558, 1, 0
    %v1575 = vsel %vm1559, 1, 0
    %v1576 = vcvt.s32.f32 %v1560
    %v1577 = vcvt.s32.f32 %v1561
    %v1578 = vcvt.s32.f32 %v1562
    %v1579 = vcvt.s32.f32 %v1563
    %v1580 = vcvt.s32.f32 %v1564
    %v1581 = vcvt.s32.f32 %v1565
    %v1582 = vcvt.s32.f32 %v1566
    %v1583 = vcvt.s32.f32 %v1567
    %v1584 = vcvt.s32.f32 %v1568
    %v1585 = vcvt.s32.f32 %v1569
    %v1586 = vcvt.s32.f32 %v1570
    %v1587 = vcvt.s32.f32 %v1571
    %v1588 = vcvt.s32.f32 %v1572
    %v1589 = vcvt.s32.f32 %v1573
    %v1590 = vcvt.s32.f32 %v1574
    %v1591 = vcvt.s32.f32 %v1575
    %v1592 = vmul.f32 %v1576, %v1281
    %v1593 = vmul.f32 %v1577, %v1283
    %v1594 = vmul.f32 %v1578, %v1286
    %v1595 = vmul.f32 %v1579, %v1288
    %v1596 = vmul.f32 %v1580, %v1291
    %v1597 = vmul.f32 %v1581, %v1293
    %v1598 = vmul.f32 %v1582, %v1296
    %v1599 = vmul.f32 %v1583, %v1298
    %v1600 = vmul.f32 %v1584, %v1301
    %v1601 = vmul.f32 %v1585, %v1303
    %v1602 = vmul.f32 %v1586, %v1306
    %v1603 = vmul.f32 %v1587, %v1308
    %v1604 = vmul.f32 %v1588, %v1311
    %v1605 = vmul.f32 %v1589, %v1313
    %v1606 = vmul.f32 %v1590, %v1316
    %v1607 = vmul.f32 %v1591, %v1318
    %1608 = vadd.xlane.f32.xlu0 %v1592
    %v1609 = vpop.xlane.xlu0 %1608
    %1610 = vadd.xlane.f32.xlu0 %v1593
    %v1611 = vpop.xlane.xlu0 %1610
    %1612 = vadd.xlane.f32.xlu0 %v1594
    %v1613 = vpop.xlane.xlu0 %1612
    %1614 = vadd.xlane.f32.xlu0 %v1595
    %v1615 = vpop.xlane.xlu0 %1614
    %1616 = vadd.xlane.f32.xlu0 %v1596
    %v1617 = vpop.xlane.xlu0 %1616
    %1618 = vadd.xlane.f32.xlu0 %v1597
    %v1619 = vpop.xlane.xlu0 %1618
    %1620 = vadd.xlane.f32.xlu0 %v1598
    %v1621 = vpop.xlane.xlu0 %1620
    %1622 = vadd.xlane.f32.xlu0 %v1599
    %v1623 = vpop.xlane.xlu0 %1622
    %1624 = vadd.xlane.f32.xlu0 %v1600
    %v1625 = vpop.xlane.xlu0 %1624
    %1626 = vadd.xlane.f32.xlu0 %v1601
    %v1627 = vpop.xlane.xlu0 %1626
    %1628 = vadd.xlane.f32.xlu0 %v1602
    %v1629 = vpop.xlane.xlu0 %1628
    %1630 = vadd.xlane.f32.xlu0 %v1603
    %v1631 = vpop.xlane.xlu0 %1630
    %1632 = vadd.xlane.f32.xlu0 %v1604
    %v1633 = vpop.xlane.xlu0 %1632
    %1634 = vadd.xlane.f32.xlu0 %v1605
    %v1635 = vpop.xlane.xlu0 %1634
    %1636 = vadd.xlane.f32.xlu0 %v1606
    %v1637 = vpop.xlane.xlu0 %1636
    %1638 = vadd.xlane.f32.xlu0 %v1607
    %v1639 = vpop.xlane.xlu0 %1638
    %v1640 = vsub.f32 %v1464, %v1609
    %v1641 = vsub.f32 %v1465, %v1611
    %v1642 = vsub.f32 %v1466, %v1613
    %v1643 = vsub.f32 %v1467, %v1615
    %v1644 = vsub.f32 %v1468, %v1617
    %v1645 = vsub.f32 %v1469, %v1619
    %v1646 = vsub.f32 %v1470, %v1621
    %v1647 = vsub.f32 %v1471, %v1623
    %v1648 = vsub.f32 %v1472, %v1625
    %v1649 = vsub.f32 %v1473, %v1627
    %v1650 = vsub.f32 %v1474, %v1629
    %v1651 = vsub.f32 %v1475, %v1631
    %v1652 = vsub.f32 %v1476, %v1633
    %v1653 = vsub.f32 %v1477, %v1635
    %v1654 = vsub.f32 %v1478, %v1637
    %v1655 = vsub.f32 %v1479, %v1639
    %vm1656 = vcmp.eq.s32.totalorder %v141, 0
    %v1657 = vsel %vm1656, %v1640, 0.0
    %v1658 = vsel %vm1656, %v1641, 0.0
    %v1659 = vsel %vm1656, %v1642, 0.0
    %v1660 = vsel %vm1656, %v1643, 0.0
    %v1661 = vsel %vm1656, %v1644, 0.0
    %v1662 = vsel %vm1656, %v1645, 0.0
    %v1663 = vsel %vm1656, %v1646, 0.0
    %v1664 = vsel %vm1656, %v1647, 0.0
    %v1665 = vsel %vm1656, %v1648, 0.0
    %v1666 = vsel %vm1656, %v1649, 0.0
    %v1667 = vsel %vm1656, %v1650, 0.0
    %v1668 = vsel %vm1656, %v1651, 0.0
    %v1669 = vsel %vm1656, %v1652, 0.0
    %v1670 = vsel %vm1656, %v1653, 0.0
    %v1671 = vsel %vm1656, %v1654, 0.0
    %v1672 = vsel %vm1656, %v1655, 0.0
    %vm1673 = vcmp.eq.s32.totalorder %v141, 1
    %1675 = vset.pattern.permute.xlu0 0
    %1676 = vperm.xlu0 %1675, %v1182
    %v1677 = vpop.permute.xlu0 %1676
    %1680 = vset.pattern.permute.xlu0 0
    %1681 = vperm.xlu0 %1680, %v1183
    %v1682 = vpop.permute.xlu0 %1681
    %1685 = vset.pattern.permute.xlu0 0
    %1686 = vperm.xlu0 %1685, %v1184
    %v1687 = vpop.permute.xlu0 %1686
    %1690 = vset.pattern.permute.xlu0 0
    %1691 = vperm.xlu0 %1690, %v1185
    %v1692 = vpop.permute.xlu0 %1691
    %1695 = vset.pattern.permute.xlu0 0
    %1696 = vperm.xlu0 %1695, %v1186
    %v1697 = vpop.permute.xlu0 %1696
    %1700 = vset.pattern.permute.xlu0 0
    %1701 = vperm.xlu0 %1700, %v1187
    %v1702 = vpop.permute.xlu0 %1701
    %1705 = vset.pattern.permute.xlu0 0
    %1706 = vperm.xlu0 %1705, %v1188
    %v1707 = vpop.permute.xlu0 %1706
    %1710 = vset.pattern.permute.xlu0 0
    %1711 = vperm.xlu0 %1710, %v1189
    %v1712 = vpop.permute.xlu0 %1711
    %1715 = vset.pattern.permute.xlu0 0
    %1716 = vperm.xlu0 %1715, %v1190
    %v1717 = vpop.permute.xlu0 %1716
    %1720 = vset.pattern.permute.xlu0 0
    %1721 = vperm.xlu0 %1720, %v1191
    %v1722 = vpop.permute.xlu0 %1721
    %1725 = vset.pattern.permute.xlu0 0
    %1726 = vperm.xlu0 %1725, %v1192
    %v1727 = vpop.permute.xlu0 %1726
    %1730 = vset.pattern.permute.xlu0 0
    %1731 = vperm.xlu0 %1730, %v1193
    %v1732 = vpop.permute.xlu0 %1731
    %1735 = vset.pattern.permute.xlu0 0
    %1736 = vperm.xlu0 %1735, %v1194
    %v1737 = vpop.permute.xlu0 %1736
    %1740 = vset.pattern.permute.xlu0 0
    %1741 = vperm.xlu0 %1740, %v1195
    %v1742 = vpop.permute.xlu0 %1741
    %1745 = vset.pattern.permute.xlu0 0
    %1746 = vperm.xlu0 %1745, %v1196
    %v1747 = vpop.permute.xlu0 %1746
    %1750 = vset.pattern.permute.xlu0 0
    %1751 = vperm.xlu0 %1750, %v1197
    %v1752 = vpop.permute.xlu0 %1751
    %v1754 = vsel %vm1673, %v1677, 0.0
    %v1755 = vsel %vm1673, %v1682, 0.0
    %v1756 = vsel %vm1673, %v1687, 0.0
    %v1757 = vsel %vm1673, %v1692, 0.0
    %v1758 = vsel %vm1673, %v1697, 0.0
    %v1759 = vsel %vm1673, %v1702, 0.0
    %v1760 = vsel %vm1673, %v1707, 0.0
    %v1761 = vsel %vm1673, %v1712, 0.0
    %v1762 = vsel %vm1673, %v1717, 0.0
    %v1763 = vsel %vm1673, %v1722, 0.0
    %v1764 = vsel %vm1673, %v1727, 0.0
    %v1765 = vsel %vm1673, %v1732, 0.0
    %v1766 = vsel %vm1673, %v1737, 0.0
    %v1767 = vsel %vm1673, %v1742, 0.0
    %v1768 = vsel %vm1673, %v1747, 0.0
    %v1769 = vsel %vm1673, %v1752, 0.0
    %v1770 = vadd.f32 %v1657, %v1754
    %v1771 = vadd.f32 %v1658, %v1755
    %v1772 = vadd.f32 %v1659, %v1756
    %v1773 = vadd.f32 %v1660, %v1757
    %v1774 = vadd.f32 %v1661, %v1758
    %v1775 = vadd.f32 %v1662, %v1759
    %v1776 = vadd.f32 %v1663, %v1760
    %v1777 = vadd.f32 %v1664, %v1761
    %v1778 = vadd.f32 %v1665, %v1762
    %v1779 = vadd.f32 %v1666, %v1763
    %v1780 = vadd.f32 %v1667, %v1764
    %v1781 = vadd.f32 %v1668, %v1765
    %v1782 = vadd.f32 %v1669, %v1766
    %v1783 = vadd.f32 %v1670, %v1767
    %v1784 = vadd.f32 %v1671, %v1768
    %v1785 = vadd.f32 %v1672, %v1769
    %1786 = vst [vmem:[%s7] sm:$0xff] %v1770
    %1787 = vst [vmem:[%s7 + $0x8] sm:$0xff] %v1771
    %1788 = vst [vmem:[%s7 + $0x10] sm:$0xff] %v1772
    %1789 = vst [vmem:[%s7 + $0x18] sm:$0xff] %v1773
    %1790 = vst [vmem:[%s7 + $0x20] sm:$0xff] %v1774
    %1791 = vst [vmem:[%s7 + $0x28] sm:$0xff] %v1775
    %1792 = vst [vmem:[%s7 + $0x30] sm:$0xff] %v1776
    %1793 = vst [vmem:[%s7 + $0x38] sm:$0xff] %v1777
    %1794 = vst [vmem:[%s7 + $0x40] sm:$0xff] %v1778
    %1795 = vst [vmem:[%s7 + $0x48] sm:$0xff] %v1779
    %1796 = vst [vmem:[%s7 + $0x50] sm:$0xff] %v1780
    %1797 = vst [vmem:[%s7 + $0x58] sm:$0xff] %v1781
    %1798 = vst [vmem:[%s7 + $0x60] sm:$0xff] %v1782
    %1799 = vst [vmem:[%s7 + $0x68] sm:$0xff] %v1783
    %1800 = vst [vmem:[%s7 + $0x70] sm:$0xff] %v1784
    %1801 = vst [vmem:[%s7 + $0x78] sm:$0xff] %v1785
    // Predicated region
    $region26: #{_env_forward_jit.1} parent=1 // pred_check
      _
    $region27: #{_env_forward_jit.1} parent=1 // pred_check_branch
      %1803 = sbr.rel (0) target = $region29
    $region28: #{_env_forward_jit.1} parent=1 // pred_region
      %1805 = vsyncadd [#allocation3], 0
      %s1806 = sshll.u32 [#allocation2], 4
      %s1807 = int_to_ptr.vmem [resolvable:$true] %s1806
      %s1808 = sshll.u32 %s6, 4
      %s1809 = int_to_ptr.hbm [resolvable:$true] %s1808
      %1814 = dma.vmem_to_hbm [thread:$0]  %s1807, 2048, %s1809, [#allocation3], 128, 128, 8
    $region29: #{_env_forward_jit.1} parent=1 // pred_fallthru
      _
    // Predicated region
    $region30: #{_env_forward_jit.1} parent=1 // pred_check
      _
    $region31: #{_env_forward_jit.1} parent=1 // pred_check_branch
      %1816 = sbr.rel (0) target = $region33
    $region32: #{_env_forward_jit.1} parent=1 // pred_region
      _
    $region33: #{_env_forward_jit.1} parent=1 // pred_fallthru
      _
    // Predicated region
    $region34: #{_env_forward_jit.1} parent=1 // pred_check
      _
    $region35: #{_env_forward_jit.1} parent=1 // pred_check_branch
      %1818 = sbr.rel (0) target = $region37
    $region36: #{_env_forward_jit.1} parent=1 // pred_region
      %1820 = dma.done [#allocation3], 2048
    $region37: #{_env_forward_jit.1} parent=1 // pred_fallthru
      _
    // Predicated region
    $region38: #{_env_forward_jit.1} parent=1 // pred_check
      _
    $region39: #{_env_forward_jit.1} parent=1 // pred_check_branch
      %1822 = sbr.rel (0) target = $region41
    $region40: #{_env_forward_jit.1} parent=1 // pred_region
      _
    $region41: #{_env_forward_jit.1} parent=1 // pred_fallthru
      _
    %1823 = vsyncpa [#allocation3], 1

</llo_original>
